<compile_context>
chip_gen: v7x
topology: tpu7x:2x2x1
jax: 0.10.0
libtpu: 0.0.40
codegen_flags: <defaults>
</compile_context>

<pallas_src>
import math
import functools

import jax
import jax.numpy as jnp
from jax.experimental import pallas as pl
from jax.experimental.pallas import tpu as pltpu


def block_kernel(x_ref, cos_ref, sin_ref,
                 ln1_ref, wqkv_ref, bqkv_ref, wpo_ref, bpo_ref,
                 ln2_ref, wf12_ref, bf12_ref, wp2_ref, bp2_ref, out_ref,
                 *, n_head, n_kv_head, head_dim, window_size, eps):
    T, C = x_ref.shape
    hd = head_dim
    half = hd // 2
    n_rep = n_head // n_kv_head
    q_dim = n_head * hd
    kv_dim = n_kv_head * hd
    H = wf12_ref.shape[1] // 2                          # 4 * C

    x = x_ref[...]                                      # (T, C) f32

    def rmsnorm(v, w):
        ms = jnp.mean(v * v, axis=-1, keepdims=True)
        return v * jax.lax.rsqrt(ms + eps) * w

    # RoPE tables (rotate-half layout, sin sign already folded).  Hoisted once.
    cosf = cos_ref[...]                                 # (T, hd) f32
    sinf = sin_ref[...]                                 # (T, hd) f32

    def rope(v):                                        # v: (heads, T, hd) f32
        swapped = jnp.concatenate([v[..., half:], v[..., :half]], axis=-1)
        return v * cosf + swapped * sinf

    # ---- attention branch -------------------------------------------------
    n1 = rmsnorm(x, ln1_ref[...])
    # one wide, lane-dense QKV matmul (bf16 in, f32 accumulate)
    qkv = jnp.dot(n1.astype(jnp.bfloat16), wqkv_ref[...],
                  preferred_element_type=jnp.float32) + bqkv_ref[...]

    q2 = qkv[:, :q_dim]                                 # (T, n_head*hd)
    k2 = qkv[:, q_dim:q_dim + kv_dim]                   # (T, n_kv_head*hd)
    v2 = qkv[:, q_dim + kv_dim:]                        # (T, n_kv_head*hd)

    # Put heads on a leading batch dim (static layout slices only — no matmuls).
    # GQA kv replication (head h -> kv head h // n_rep) is done in the stack.
    qh = jnp.stack([q2[:, h * hd:(h + 1) * hd] for h in range(n_head)], axis=0)
    kh = jnp.stack([k2[:, (h // n_rep) * hd:(h // n_rep + 1) * hd]
                    for h in range(n_head)], axis=0)
    vh = jnp.stack([v2[:, (h // n_rep) * hd:(h // n_rep + 1) * hd]
                    for h in range(n_head)], axis=0)

    qh = rope(qh)        # 1/sqrt(head_dim) scale already folded into Q weights
    kh = rope(kh)

    # sliding-window causal mask generated in-kernel (no (T, T) HBM operand)
    row = jax.lax.broadcasted_iota(jnp.int32, (T, T), 0)
    col = jax.lax.broadcasted_iota(jnp.int32, (T, T), 1)
    allowed = (col <= row) & (col > row - window_size)

    # head-batched score / PV matmuls (bf16 in, f32 accumulate)
    s = jnp.einsum('bqd,bkd->bqk', qh.astype(jnp.bfloat16), kh.astype(jnp.bfloat16),
                   preferred_element_type=jnp.float32)        # (n_head, T, T)
    s = jnp.where(allowed, s, jnp.float32(-1e30))
    m = jnp.max(s, axis=-1, keepdims=True)
    e = jnp.exp(s - m)
    p = e * pl.reciprocal(jnp.sum(e, axis=-1, keepdims=True), approx=True)

    o = jnp.einsum('bqk,bkd->bqd', p.astype(jnp.bfloat16), vh.astype(jnp.bfloat16),
                   preferred_element_type=jnp.float32)        # (n_head, T, hd)

    # reassemble (T, n_head*hd) and do ONE output projection matmul
    y = jnp.concatenate([o[h] for h in range(n_head)], axis=-1)
    attn = jnp.dot(y.astype(jnp.bfloat16), wpo_ref[...],
                   preferred_element_type=jnp.float32) + bpo_ref[...]
    x1 = x + attn                                       # residual 1

    # ---- MLP branch (SwiGLU), fc1 & fc2 fused into one wide matmul ---------
    n2 = rmsnorm(x1, ln2_ref[...]).astype(jnp.bfloat16)
    f = jnp.dot(n2, wf12_ref[...], preferred_element_type=jnp.float32) + bf12_ref[...]
    g = f[:, :H]                                         # gate branch (c_fc1)
    lin = f[:, H:]                                       # linear branch (c_fc2)
    hidden = (g * jax.nn.sigmoid(g)) * lin               # silu(g) * lin, f32
    mlp = jnp.dot(hidden.astype(jnp.bfloat16), wp2_ref[...],
                  preferred_element_type=jnp.float32) + bp2_ref[...]

    out_ref[...] = x1 + mlp                              # residual 2


def _prep_params(params, cos_half, sin_half, *, n_head, n_kv_head, head_dim):
    """Host-side weight prep: de-interleave Q/K columns into the rotate-half RoPE
    layout, fold 1/sqrt(head_dim) into the Q projection, build the de-interleaved
    (sign-folded) cos/sin tables, fuse c_fc1|c_fc2, and cast matmul weights to bf16."""
    hd = head_dim
    q_dim = n_head * hd
    kv_dim = n_kv_head * hd
    local = jnp.concatenate([jnp.arange(0, hd, 2), jnp.arange(1, hd, 2)])

    def head_perm(nh):
        return (jnp.arange(nh)[:, None] * hd + local[None, :]).reshape(-1)

    qperm, kperm = head_perm(n_head), head_perm(n_kv_head)
    scale = 1.0 / math.sqrt(hd)

    wqkv = params['wqkv_t']                  # (C, q_dim + 2*kv_dim) f32
    bqkv = params['bqkv'][0]                 # (q_dim + 2*kv_dim,)
    wq = wqkv[:, :q_dim][:, qperm] * scale
    wk = wqkv[:, q_dim:q_dim + kv_dim][:, kperm]
    wv = wqkv[:, q_dim + kv_dim:]
    bq = bqkv[:q_dim][qperm] * scale
    bk = bqkv[q_dim:q_dim + kv_dim][kperm]
    bv = bqkv[q_dim + kv_dim:]

    # de-interleaved cos/sin; sign of the swapped half folded into sin
    cos_d = jnp.concatenate([cos_half, cos_half], axis=-1).astype(jnp.float32)
    sin_d = jnp.concatenate([-sin_half, sin_half], axis=-1).astype(jnp.float32)

    bf16 = jnp.bfloat16
    f32 = jnp.float32
    return dict(
        cos_d=cos_d, sin_d=sin_d,
        ln1=params['ln1_w'].astype(f32),
        wqkv=jnp.concatenate([wq, wk, wv], axis=1).astype(bf16),
        bqkv=jnp.concatenate([bq, bk, bv])[None, :].astype(f32),
        wpo=params['wpo_t'].astype(bf16), bpo=params['bpo'].astype(f32),
        ln2=params['ln2_w'].astype(f32),
        wf12=jnp.concatenate([params['wf1_t'], params['wf2_t']], axis=1).astype(bf16),
        bf12=jnp.concatenate([params['bf1'], params['bf2']], axis=1).astype(f32),
        wp2=params['wp2_t'].astype(bf16), bp2=params['bp2'].astype(f32),
    )


def block_forward(x, params, cos_half, sin_half, *,
                  n_head, n_kv_head, head_dim, window_size, eps=1e-6):
    B, T, C = x.shape
    qkv_out = (2 * n_kv_head + n_head) * head_dim
    H = 4 * C

    p = _prep_params(params, cos_half, sin_half,
                     n_head=n_head, n_kv_head=n_kv_head, head_dim=head_dim)

    kernel = functools.partial(block_kernel, n_head=n_head, n_kv_head=n_kv_head,
                               head_dim=head_dim, window_size=window_size, eps=eps)

    def const(shape):
        # whole-array block, same tile every grid step (weights / RoPE tables)
        return pl.BlockSpec(shape, lambda b: (0, 0))

    in_specs = [
        pl.BlockSpec((None, T, C), lambda b: (b, 0, 0)),   # x: one sequence / step
        const((T, head_dim)),                              # cos (rotate-half layout)
        const((T, head_dim)),                              # sin (sign-folded)
        const((1, C)),                                     # ln_1 weight
        const((C, qkv_out)),                               # c_attn W^T (bf16, Q permuted+scaled)
        const((1, qkv_out)),                               # c_attn b
        const((C, C)),                                     # attn c_proj W^T (bf16)
        const((1, C)),                                     # attn c_proj b
        const((1, C)),                                     # ln_2 weight
        const((C, 2 * H)),                                 # fused c_fc1|c_fc2 W^T (bf16)
        const((1, 2 * H)),                                 # fused c_fc1|c_fc2 b
        const((H, C)),                                     # mlp c_proj W^T (bf16)
        const((1, C)),                                     # mlp c_proj b
    ]
    out_spec = pl.BlockSpec((None, T, C), lambda b: (b, 0, 0))

    return pl.pallas_call(
        kernel,
        out_shape=jax.ShapeDtypeStruct((B, T, C), jnp.float32),
        grid=(B,),
        in_specs=in_specs,
        out_specs=out_spec,
        compiler_params=pltpu.CompilerParams(dimension_semantics=("parallel",)),
    )(x, p['cos_d'], p['sin_d'],
      p['ln1'], p['wqkv'], p['bqkv'], p['wpo'], p['bpo'],
      p['ln2'], p['wf12'], p['bf12'], p['wp2'], p['bp2'])


# ---------------- pure-JAX reference (mirrors the PyTorch module) -------------
def _rope_ref(x, cos, sin):
    # x: (B, T, H, hd); cos/sin: (T, hd//2); interleaved (even, odd) complex pairs
    B, T, H, hd = x.shape
    x2 = x.reshape(B, T, H, hd // 2, 2)
    xe, xo = x2[..., 0], x2[..., 1]
    c = cos[None, :, None, :]
    s = sin[None, :, None, :]
    oe = xe * c - xo * s
    oo = xe * s + xo * c
    return jnp.stack([oe, oo], axis=-1).reshape(B, T, H, hd)


def block_ref(x, params, cos, sin, mask, n_head, n_kv_head, head_dim, eps=1e-6):
    def rms(v, w):
        return v * jax.lax.rsqrt(jnp.mean(v * v, -1, keepdims=True) + eps) * w

    B, T, C = x.shape
    n1 = rms(x, params['ln1_w'][0])
    qkv = n1 @ params['wqkv_t'] + params['bqkv'][0]
    q_dim, kv_dim = n_head * head_dim, n_kv_head * head_dim
    q = qkv[..., :q_dim].reshape(B, T, n_head, head_dim)
    k = qkv[..., q_dim:q_dim + kv_dim].reshape(B, T, n_kv_head, head_dim)
    v = qkv[..., q_dim + kv_dim:].reshape(B, T, n_kv_head, head_dim)
    q = _rope_ref(q, cos, sin)
    k = _rope_ref(k, cos, sin)
    n_rep = n_head // n_kv_head
    k = jnp.repeat(k, n_rep, axis=2)
    v = jnp.repeat(v, n_rep, axis=2)
    att = jnp.einsum('bthd,bshd->bhts', q, k) * (1.0 / math.sqrt(head_dim))
    att = att + mask[None, None]
    att = jax.nn.softmax(att, axis=-1)
    y = jnp.einsum('bhts,bshd->bthd', att, v).reshape(B, T, C)
    y = y @ params['wpo_t'] + params['bpo'][0]
    x1 = x + y
    n2 = rms(x1, params['ln2_w'][0])
    g = n2 @ params['wf1_t'] + params['bf1'][0]
    mlp = (jax.nn.silu(g) * (n2 @ params['wf2_t'] + params['bf2'][0])) @ params['wp2_t'] + params['bp2'][0]
    return x1 + mlp


if __name__ == "__main__":
    # small config consistent with the module: n_embd=32, n_head=4, n_kv_head=2
    B, T, C = 2, 8, 32
    n_head, n_kv_head = 4, 2
    head_dim = C // n_head
    window_size = 4
    eps = 1e-6

    key = jax.random.PRNGKey(0)
    keys = jax.random.split(key, 16)

    def w(k, shape, scale=0.02):
        return (scale * jax.random.normal(k, shape)).astype(jnp.float32)

    qkv_out = (2 * n_kv_head + n_head) * head_dim
    H = 4 * C
    params = {
        'ln1_w': (1.0 + w(keys[0], (1, C), 0.1)).astype(jnp.float32),
        'wqkv_t': w(keys[1], (C, qkv_out)),
        'bqkv': w(keys[2], (1, qkv_out), 0.01),
        'wpo_t': w(keys[3], (C, C)),
        'bpo': w(keys[4], (1, C), 0.01),
        'ln2_w': (1.0 + w(keys[5], (1, C), 0.1)).astype(jnp.float32),
        'wf1_t': w(keys[6], (C, H)),
        'bf1': w(keys[7], (1, H), 0.01),
        'wf2_t': w(keys[8], (C, H)),
        'bf2': w(keys[9], (1, H), 0.01),
        'wp2_t': w(keys[10], (H, C)),
        'bp2': w(keys[11], (1, C), 0.01),
    }
    x = jax.random.normal(keys[12], (B, T, C), dtype=jnp.float32)

    # RoPE freqs (llama-style), built host-side in half-width form
    theta = 10000.0
    inv_freq = 1.0 / (theta ** (jnp.arange(0, head_dim, 2, dtype=jnp.float32) / head_dim))
    t = jnp.arange(T, dtype=jnp.float32)
    freqs = jnp.outer(t, inv_freq)                       # (T, head_dim // 2)
    cos_half, sin_half = jnp.cos(freqs), jnp.sin(freqs)

    out = block_forward(x, params, cos_half, sin_half,
                        n_head=n_head, n_kv_head=n_kv_head, head_dim=head_dim,
                        window_size=window_size, eps=eps)
    out = jax.block_until_ready(out)

    # reference (interleaved RoPE, explicit additive -inf mask, all f32)
    i = jnp.arange(T)[:, None]
    j = jnp.arange(T)[None, :]
    allowed = (j <= i) & (j >= i - window_size + 1)
    mask = jnp.where(allowed, 0.0, -jnp.inf).astype(jnp.float32)
    ref = block_ref(x, params, cos_half, sin_half, mask, n_head, n_kv_head, head_dim, eps)

    err = float(jnp.max(jnp.abs(out - ref)))
    assert jnp.allclose(out, ref, atol=1e-2, rtol=1e-2), err   # bf16-matmul tolerance
    print("KERNEL_OK")
</pallas_src>

<mosaic_0001>
module attributes {stable_mosaic.version = 11 : i64} {
  func.func @block_kernel(%arg0: i32, %arg1: memref<1x8x32xf32, #tpu.memory_space<vmem>>, %arg2: memref<8x8xf32, #tpu.memory_space<vmem>>, %arg3: memref<8x8xf32, #tpu.memory_space<vmem>>, %arg4: memref<1x32xf32, #tpu.memory_space<vmem>>, %arg5: memref<32x64xbf16, #tpu.memory_space<vmem>>, %arg6: memref<1x64xf32, #tpu.memory_space<vmem>>, %arg7: memref<32x32xbf16, #tpu.memory_space<vmem>>, %arg8: memref<1x32xf32, #tpu.memory_space<vmem>>, %arg9: memref<1x32xf32, #tpu.memory_space<vmem>>, %arg10: memref<32x256xbf16, #tpu.memory_space<vmem>>, %arg11: memref<1x256xf32, #tpu.memory_space<vmem>>, %arg12: memref<128x32xbf16, #tpu.memory_space<vmem>>, %arg13: memref<1x32xf32, #tpu.memory_space<vmem>>, %arg14: memref<1x8x32xf32, #tpu.memory_space<vmem>>) attributes {dimension_semantics = [#tpu.dimension_semantics<parallel>], iteration_bounds = array<i64: 2>, scalar_prefetch = 0 : i64, scratch_operands = 0 : i64, tpu.core_type = #tpu.core_type<tc>, window_params = [{transform_indices = @transform_0, window_bounds = array<i64: 1, 8, 32>}, {pipeline_mode = #tpu.pipeline_mode<synchronous>, transform_indices = @transform_1, window_bounds = array<i64: 8, 8>}, {pipeline_mode = #tpu.pipeline_mode<synchronous>, transform_indices = @transform_2, window_bounds = array<i64: 8, 8>}, {pipeline_mode = #tpu.pipeline_mode<synchronous>, transform_indices = @transform_3, window_bounds = array<i64: 1, 32>}, {pipeline_mode = #tpu.pipeline_mode<synchronous>, transform_indices = @transform_4, window_bounds = array<i64: 32, 64>}, {pipeline_mode = #tpu.pipeline_mode<synchronous>, transform_indices = @transform_5, window_bounds = array<i64: 1, 64>}, {pipeline_mode = #tpu.pipeline_mode<synchronous>, transform_indices = @transform_6, window_bounds = array<i64: 32, 32>}, {pipeline_mode = #tpu.pipeline_mode<synchronous>, transform_indices = @transform_7, window_bounds = array<i64: 1, 32>}, {pipeline_mode = #tpu.pipeline_mode<synchronous>, transform_indices = @transform_8, window_bounds = array<i64: 1, 32>}, {pipeline_mode = #tpu.pipeline_mode<synchronous>, transform_indices = @transform_9, window_bounds = array<i64: 32, 256>}, {pipeline_mode = #tpu.pipeline_mode<synchronous>, transform_indices = @transform_10, window_bounds = array<i64: 1, 256>}, {pipeline_mode = #tpu.pipeline_mode<synchronous>, transform_indices = @transform_11, window_bounds = array<i64: 128, 32>}, {pipeline_mode = #tpu.pipeline_mode<synchronous>, transform_indices = @transform_12, window_bounds = array<i64: 1, 32>}, {transform_indices = @transform_13, window_bounds = array<i64: 1, 8, 32>}]} {
    %c0 = arith.constant 0 : index
    %c0_0 = arith.constant 0 : index
    %c0_1 = arith.constant 0 : index
    %0 = vector.load %arg1[%c0, %c0_0, %c0_1] : memref<1x8x32xf32, #tpu.memory_space<vmem>>, vector<1x8x32xf32>
    %1 = vector.shape_cast %0 : vector<1x8x32xf32> to vector<8x32xf32>
    %c0_2 = arith.constant 0 : index
    %c0_3 = arith.constant 0 : index
    %2 = vector.load %arg2[%c0_2, %c0_3] : memref<8x8xf32, #tpu.memory_space<vmem>>, vector<8x8xf32>
    %c0_4 = arith.constant 0 : index
    %c0_5 = arith.constant 0 : index
    %3 = vector.load %arg3[%c0_4, %c0_5] : memref<8x8xf32, #tpu.memory_space<vmem>>, vector<8x8xf32>
    %c0_6 = arith.constant 0 : index
    %c0_7 = arith.constant 0 : index
    %4 = vector.load %arg4[%c0_6, %c0_7] : memref<1x32xf32, #tpu.memory_space<vmem>>, vector<1x32xf32>
    %5 = arith.mulf %1, %1 : vector<8x32xf32>
    %cst = arith.constant dense<0.000000e+00> : vector<8xf32>
    %6 = vector.multi_reduction <add>, %5, %cst [1] : vector<8x32xf32> to vector<8xf32>
    %7 = vector.shape_cast %6 : vector<8xf32> to vector<8x1xf32>
    %cst_8 = arith.constant 3.200000e+01 : f32
    %8 = vector.broadcast %cst_8 : f32 to vector<8x1xf32>
    %9 = arith.divf %7, %8 : vector<8x1xf32>
    %cst_9 = arith.constant 9.99999997E-7 : f32
    %10 = vector.broadcast %cst_9 : f32 to vector<8x1xf32>
    %11 = arith.addf %9, %10 : vector<8x1xf32>
    %12 = math.rsqrt %11 : vector<8x1xf32>
    %13 = vector.broadcast %12 : vector<8x1xf32> to vector<8x32xf32>
    %14 = arith.mulf %1, %13 : vector<8x32xf32>
    %15 = vector.broadcast %4 : vector<1x32xf32> to vector<8x32xf32>
    %16 = arith.mulf %14, %15 : vector<8x32xf32>
    %17 = arith.truncf %16 : vector<8x32xf32> to vector<8x32xbf16>
    %c0_10 = arith.constant 0 : index
    %c0_11 = arith.constant 0 : index
    %18 = vector.load %arg5[%c0_10, %c0_11] : memref<32x64xbf16, #tpu.memory_space<vmem>>, vector<32x64xbf16>
    %cst_12 = arith.constant dense<0.000000e+00> : vector<8x64xf32>
    %19 = tpu.matmul %17, %18, %cst_12 {dimension_numbers = #tpu.dot_dimension_numbers<[1], [0], [0], [1], [0, 0, 1, 1], [], []>} : vector<8x32xbf16>, vector<32x64xbf16>, vector<8x64xf32> -> vector<8x64xf32>
    %c0_13 = arith.constant 0 : index
    %c0_14 = arith.constant 0 : index
    %20 = vector.load %arg6[%c0_13, %c0_14] : memref<1x64xf32, #tpu.memory_space<vmem>>, vector<1x64xf32>
    %21 = vector.broadcast %20 : vector<1x64xf32> to vector<8x64xf32>
    %22 = arith.addf %19, %21 : vector<8x64xf32>
    %23 = vector.extract_strided_slice %22 {offsets = [0, 0], sizes = [8, 32], strides = [1, 1]} : vector<8x64xf32> to vector<8x32xf32>
    %24 = vector.extract_strided_slice %22 {offsets = [0, 32], sizes = [8, 16], strides = [1, 1]} : vector<8x64xf32> to vector<8x16xf32>
    %25 = vector.extract_strided_slice %22 {offsets = [0, 48], sizes = [8, 16], strides = [1, 1]} : vector<8x64xf32> to vector<8x16xf32>
    %26 = vector.extract_strided_slice %23 {offsets = [0, 0], sizes = [8, 8], strides = [1, 1]} : vector<8x32xf32> to vector<8x8xf32>
    %27 = vector.extract_strided_slice %23 {offsets = [0, 8], sizes = [8, 8], strides = [1, 1]} : vector<8x32xf32> to vector<8x8xf32>
    %28 = vector.extract_strided_slice %23 {offsets = [0, 16], sizes = [8, 8], strides = [1, 1]} : vector<8x32xf32> to vector<8x8xf32>
    %29 = vector.extract_strided_slice %23 {offsets = [0, 24], sizes = [8, 8], strides = [1, 1]} : vector<8x32xf32> to vector<8x8xf32>
    %30 = vector.shape_cast %26 : vector<8x8xf32> to vector<1x8x8xf32>
    %31 = vector.shape_cast %27 : vector<8x8xf32> to vector<1x8x8xf32>
    %32 = vector.shape_cast %28 : vector<8x8xf32> to vector<1x8x8xf32>
    %33 = vector.shape_cast %29 : vector<8x8xf32> to vector<1x8x8xf32>
    %34 = tpu.concatenate %30, %31, %32, %33 in 0 : vector<1x8x8xf32>, vector<1x8x8xf32>, vector<1x8x8xf32>, vector<1x8x8xf32> -> vector<4x8x8xf32>
    %35 = vector.extract_strided_slice %24 {offsets = [0, 0], sizes = [8, 8], strides = [1, 1]} : vector<8x16xf32> to vector<8x8xf32>
    %36 = vector.extract_strided_slice %24 {offsets = [0, 0], sizes = [8, 8], strides = [1, 1]} : vector<8x16xf32> to vector<8x8xf32>
    %37 = vector.extract_strided_slice %24 {offsets = [0, 8], sizes = [8, 8], strides = [1, 1]} : vector<8x16xf32> to vector<8x8xf32>
    %38 = vector.extract_strided_slice %24 {offsets = [0, 8], sizes = [8, 8], strides = [1, 1]} : vector<8x16xf32> to vector<8x8xf32>
    %39 = vector.shape_cast %35 : vector<8x8xf32> to vector<1x8x8xf32>
    %40 = vector.shape_cast %36 : vector<8x8xf32> to vector<1x8x8xf32>
    %41 = vector.shape_cast %37 : vector<8x8xf32> to vector<1x8x8xf32>
    %42 = vector.shape_cast %38 : vector<8x8xf32> to vector<1x8x8xf32>
    %43 = tpu.concatenate %39, %40, %41, %42 in 0 : vector<1x8x8xf32>, vector<1x8x8xf32>, vector<1x8x8xf32>, vector<1x8x8xf32> -> vector<4x8x8xf32>
    %44 = vector.extract_strided_slice %25 {offsets = [0, 0], sizes = [8, 8], strides = [1, 1]} : vector<8x16xf32> to vector<8x8xf32>
    %45 = vector.extract_strided_slice %25 {offsets = [0, 0], sizes = [8, 8], strides = [1, 1]} : vector<8x16xf32> to vector<8x8xf32>
    %46 = vector.extract_strided_slice %25 {offsets = [0, 8], sizes = [8, 8], strides = [1, 1]} : vector<8x16xf32> to vector<8x8xf32>
    %47 = vector.extract_strided_slice %25 {offsets = [0, 8], sizes = [8, 8], strides = [1, 1]} : vector<8x16xf32> to vector<8x8xf32>
    %48 = vector.shape_cast %44 : vector<8x8xf32> to vector<1x8x8xf32>
    %49 = vector.shape_cast %45 : vector<8x8xf32> to vector<1x8x8xf32>
    %50 = vector.shape_cast %46 : vector<8x8xf32> to vector<1x8x8xf32>
    %51 = vector.shape_cast %47 : vector<8x8xf32> to vector<1x8x8xf32>
    %52 = tpu.concatenate %48, %49, %50, %51 in 0 : vector<1x8x8xf32>, vector<1x8x8xf32>, vector<1x8x8xf32>, vector<1x8x8xf32> -> vector<4x8x8xf32>
    %53 = vector.extract_strided_slice %34 {offsets = [0, 0, 4], sizes = [4, 8, 4], strides = [1, 1, 1]} : vector<4x8x8xf32> to vector<4x8x4xf32>
    %54 = vector.extract_strided_slice %34 {offsets = [0, 0, 0], sizes = [4, 8, 4], strides = [1, 1, 1]} : vector<4x8x8xf32> to vector<4x8x4xf32>
    %55 = tpu.concatenate %53, %54 in 2 : vector<4x8x4xf32>, vector<4x8x4xf32> -> vector<4x8x8xf32>
    %56 = vector.shape_cast %2 : vector<8x8xf32> to vector<1x8x8xf32>
    %57 = vector.broadcast %56 : vector<1x8x8xf32> to vector<4x8x8xf32>
    %58 = arith.mulf %34, %57 : vector<4x8x8xf32>
    %59 = vector.shape_cast %3 : vector<8x8xf32> to vector<1x8x8xf32>
    %60 = vector.broadcast %59 : vector<1x8x8xf32> to vector<4x8x8xf32>
    %61 = arith.mulf %55, %60 : vector<4x8x8xf32>
    %62 = arith.addf %58, %61 : vector<4x8x8xf32>
    %63 = vector.extract_strided_slice %43 {offsets = [0, 0, 4], sizes = [4, 8, 4], strides = [1, 1, 1]} : vector<4x8x8xf32> to vector<4x8x4xf32>
    %64 = vector.extract_strided_slice %43 {offsets = [0, 0, 0], sizes = [4, 8, 4], strides = [1, 1, 1]} : vector<4x8x8xf32> to vector<4x8x4xf32>
    %65 = tpu.concatenate %63, %64 in 2 : vector<4x8x4xf32>, vector<4x8x4xf32> -> vector<4x8x8xf32>
    %66 = vector.shape_cast %2 : vector<8x8xf32> to vector<1x8x8xf32>
    %67 = vector.broadcast %66 : vector<1x8x8xf32> to vector<4x8x8xf32>
    %68 = arith.mulf %43, %67 : vector<4x8x8xf32>
    %69 = vector.shape_cast %3 : vector<8x8xf32> to vector<1x8x8xf32>
    %70 = vector.broadcast %69 : vector<1x8x8xf32> to vector<4x8x8xf32>
    %71 = arith.mulf %65, %70 : vector<4x8x8xf32>
    %72 = arith.addf %68, %71 : vector<4x8x8xf32>
    %73 = tpu.iota {dimensions = array<i32: 0>} : vector<8x8xi32>
    %74 = tpu.iota {dimensions = array<i32: 1>} : vector<8x8xi32>
    %75 = arith.cmpi sle, %74, %73 : vector<8x8xi32>
    %c4_i32 = arith.constant 4 : i32
    %76 = vector.broadcast %c4_i32 : i32 to vector<8x8xi32>
    %77 = arith.subi %73, %76 : vector<8x8xi32>
    %78 = arith.cmpi sgt, %74, %77 : vector<8x8xi32>
    %79 = arith.andi %75, %78 : vector<8x8xi1>
    %80 = arith.truncf %62 : vector<4x8x8xf32> to vector<4x8x8xbf16>
    %81 = arith.truncf %72 : vector<4x8x8xf32> to vector<4x8x8xbf16>
    "tpu.trace_start"() <{level = 10 : i32, message = "bqd,bkd->bqk"}> : () -> ()
    %cst_15 = arith.constant dense<0.000000e+00> : vector<4x8x8xf32>
    %82 = tpu.matmul %80, %81, %cst_15 {dimension_numbers = #tpu.dot_dimension_numbers<[2], [2], [1], [1], [0, 0, 0, 1, 1, 1], [0], [0]>} : vector<4x8x8xbf16>, vector<4x8x8xbf16>, vector<4x8x8xf32> -> vector<4x8x8xf32>
    %cst_16 = arith.constant -1.000000e+30 : f32
    "tpu.trace_stop"() : () -> ()
    %83 = vector.shape_cast %79 : vector<8x8xi1> to vector<1x8x8xi1>
    %84 = vector.broadcast %83 : vector<1x8x8xi1> to vector<4x8x8xi1>
    %85 = vector.broadcast %cst_16 : f32 to vector<4x8x8xf32>
    %86 = arith.select %84, %82, %85 : vector<4x8x8xi1>, vector<4x8x8xf32>
    %cst_17 = arith.constant dense<0xFF800000> : vector<4x8xf32>
    %87 = vector.multi_reduction <maximumf>, %86, %cst_17 [2] : vector<4x8x8xf32> to vector<4x8xf32>
    %88 = vector.shape_cast %87 : vector<4x8xf32> to vector<4x8x1xf32>
    %89 = vector.broadcast %88 : vector<4x8x1xf32> to vector<4x8x8xf32>
    %90 = arith.subf %86, %89 : vector<4x8x8xf32>
    %91 = math.exp %90 : vector<4x8x8xf32>
    %cst_18 = arith.constant dense<0.000000e+00> : vector<4x8xf32>
    %92 = vector.multi_reduction <add>, %91, %cst_18 [2] : vector<4x8x8xf32> to vector<4x8xf32>
    %93 = vector.shape_cast %92 : vector<4x8xf32> to vector<4x8x1xf32>
    %94 = tpu.reciprocal %93 {approx = true} : vector<4x8x1xf32> -> vector<4x8x1xf32>
    %95 = vector.broadcast %94 : vector<4x8x1xf32> to vector<4x8x8xf32>
    %96 = arith.mulf %91, %95 : vector<4x8x8xf32>
    %97 = arith.truncf %96 : vector<4x8x8xf32> to vector<4x8x8xbf16>
    %98 = arith.truncf %52 : vector<4x8x8xf32> to vector<4x8x8xbf16>
    "tpu.trace_start"() <{level = 10 : i32, message = "bqk,bkd->bqd"}> : () -> ()
    %cst_19 = arith.constant dense<0.000000e+00> : vector<4x8x8xf32>
    %99 = tpu.matmul %97, %98, %cst_19 {dimension_numbers = #tpu.dot_dimension_numbers<[2], [1], [1], [2], [0, 0, 0, 1, 1, 2], [0], [0]>} : vector<4x8x8xbf16>, vector<4x8x8xbf16>, vector<4x8x8xf32> -> vector<4x8x8xf32>
    "tpu.trace_stop"() : () -> ()
    %100 = vector.extract_strided_slice %99 {offsets = [0, 0, 0], sizes = [1, 8, 8], strides = [1, 1, 1]} : vector<4x8x8xf32> to vector<1x8x8xf32>
    %101 = vector.shape_cast %100 : vector<1x8x8xf32> to vector<8x8xf32>
    %102 = vector.extract_strided_slice %99 {offsets = [1, 0, 0], sizes = [1, 8, 8], strides = [1, 1, 1]} : vector<4x8x8xf32> to vector<1x8x8xf32>
    %103 = vector.shape_cast %102 : vector<1x8x8xf32> to vector<8x8xf32>
    %104 = vector.extract_strided_slice %99 {offsets = [2, 0, 0], sizes = [1, 8, 8], strides = [1, 1, 1]} : vector<4x8x8xf32> to vector<1x8x8xf32>
    %105 = vector.shape_cast %104 : vector<1x8x8xf32> to vector<8x8xf32>
    %106 = vector.extract_strided_slice %99 {offsets = [3, 0, 0], sizes = [1, 8, 8], strides = [1, 1, 1]} : vector<4x8x8xf32> to vector<1x8x8xf32>
    %107 = vector.shape_cast %106 : vector<1x8x8xf32> to vector<8x8xf32>
    %108 = tpu.concatenate %101, %103, %105, %107 in 1 : vector<8x8xf32>, vector<8x8xf32>, vector<8x8xf32>, vector<8x8xf32> -> vector<8x32xf32>
    %109 = arith.truncf %108 : vector<8x32xf32> to vector<8x32xbf16>
    %c0_20 = arith.constant 0 : index
    %c0_21 = arith.constant 0 : index
    %110 = vector.load %arg7[%c0_20, %c0_21] : memref<32x32xbf16, #tpu.memory_space<vmem>>, vector<32x32xbf16>
    %cst_22 = arith.constant dense<0.000000e+00> : vector<8x32xf32>
    %111 = tpu.matmul %109, %110, %cst_22 {dimension_numbers = #tpu.dot_dimension_numbers<[1], [0], [0], [1], [0, 0, 1, 1], [], []>} : vector<8x32xbf16>, vector<32x32xbf16>, vector<8x32xf32> -> vector<8x32xf32>
    %c0_23 = arith.constant 0 : index
    %c0_24 = arith.constant 0 : index
    %112 = vector.load %arg8[%c0_23, %c0_24] : memref<1x32xf32, #tpu.memory_space<vmem>>, vector<1x32xf32>
    %113 = vector.broadcast %112 : vector<1x32xf32> to vector<8x32xf32>
    %114 = arith.addf %111, %113 : vector<8x32xf32>
    %115 = arith.addf %1, %114 : vector<8x32xf32>
    %c0_25 = arith.constant 0 : index
    %c0_26 = arith.constant 0 : index
    %116 = vector.load %arg9[%c0_25, %c0_26] : memref<1x32xf32, #tpu.memory_space<vmem>>, vector<1x32xf32>
    %117 = arith.mulf %115, %115 : vector<8x32xf32>
    %cst_27 = arith.constant dense<0.000000e+00> : vector<8xf32>
    %118 = vector.multi_reduction <add>, %117, %cst_27 [1] : vector<8x32xf32> to vector<8xf32>
    %119 = vector.shape_cast %118 : vector<8xf32> to vector<8x1xf32>
    %cst_28 = arith.constant 3.200000e+01 : f32
    %120 = vector.broadcast %cst_28 : f32 to vector<8x1xf32>
    %121 = arith.divf %119, %120 : vector<8x1xf32>
    %cst_29 = arith.constant 9.99999997E-7 : f32
    %122 = vector.broadcast %cst_29 : f32 to vector<8x1xf32>
    %123 = arith.addf %121, %122 : vector<8x1xf32>
    %124 = math.rsqrt %123 : vector<8x1xf32>
    %125 = vector.broadcast %124 : vector<8x1xf32> to vector<8x32xf32>
    %126 = arith.mulf %115, %125 : vector<8x32xf32>
    %127 = vector.broadcast %116 : vector<1x32xf32> to vector<8x32xf32>
    %128 = arith.mulf %126, %127 : vector<8x32xf32>
    %129 = arith.truncf %128 : vector<8x32xf32> to vector<8x32xbf16>
    %c0_30 = arith.constant 0 : index
    %c0_31 = arith.constant 0 : index
    %130 = vector.load %arg10[%c0_30, %c0_31] : memref<32x256xbf16, #tpu.memory_space<vmem>>, vector<32x256xbf16>
    %cst_32 = arith.constant dense<0.000000e+00> : vector<8x256xf32>
    %131 = tpu.matmul %129, %130, %cst_32 {dimension_numbers = #tpu.dot_dimension_numbers<[1], [0], [0], [1], [0, 0, 1, 1], [], []>} : vector<8x32xbf16>, vector<32x256xbf16>, vector<8x256xf32> -> vector<8x256xf32>
    %c0_33 = arith.constant 0 : index
    %c0_34 = arith.constant 0 : index
    %132 = vector.load %arg11[%c0_33, %c0_34] : memref<1x256xf32, #tpu.memory_space<vmem>>, vector<1x256xf32>
    %133 = vector.broadcast %132 : vector<1x256xf32> to vector<8x256xf32>
    %134 = arith.addf %131, %133 : vector<8x256xf32>
    %135 = vector.extract_strided_slice %134 {offsets = [0, 0], sizes = [8, 128], strides = [1, 1]} : vector<8x256xf32> to vector<8x128xf32>
    %136 = vector.extract_strided_slice %134 {offsets = [0, 128], sizes = [8, 128], strides = [1, 1]} : vector<8x256xf32> to vector<8x128xf32>
    %137 = arith.negf %135 : vector<8x128xf32>
    %138 = math.exp %137 : vector<8x128xf32>
    %cst_35 = arith.constant 1.000000e+00 : f32
    %139 = vector.broadcast %cst_35 : f32 to vector<8x128xf32>
    %140 = arith.addf %139, %138 : vector<8x128xf32>
    %141 = arith.divf %139, %140 : vector<8x128xf32>
    %142 = arith.mulf %135, %141 : vector<8x128xf32>
    %143 = arith.mulf %142, %136 : vector<8x128xf32>
    %144 = arith.truncf %143 : vector<8x128xf32> to vector<8x128xbf16>
    %c0_36 = arith.constant 0 : index
    %c0_37 = arith.constant 0 : index
    %145 = vector.load %arg12[%c0_36, %c0_37] : memref<128x32xbf16, #tpu.memory_space<vmem>>, vector<128x32xbf16>
    %cst_38 = arith.constant dense<0.000000e+00> : vector<8x32xf32>
    %146 = tpu.matmul %144, %145, %cst_38 {dimension_numbers = #tpu.dot_dimension_numbers<[1], [0], [0], [1], [0, 0, 1, 1], [], []>} : vector<8x128xbf16>, vector<128x32xbf16>, vector<8x32xf32> -> vector<8x32xf32>
    %c0_39 = arith.constant 0 : index
    %c0_40 = arith.constant 0 : index
    %147 = vector.load %arg13[%c0_39, %c0_40] : memref<1x32xf32, #tpu.memory_space<vmem>>, vector<1x32xf32>
    %148 = vector.broadcast %147 : vector<1x32xf32> to vector<8x32xf32>
    %149 = arith.addf %146, %148 : vector<8x32xf32>
    %150 = arith.addf %115, %149 : vector<8x32xf32>
    %c0_41 = arith.constant 0 : index
    %c0_42 = arith.constant 0 : index
    %c0_43 = arith.constant 0 : index
    %151 = vector.load %arg14[%c0_41, %c0_42, %c0_43] : memref<1x8x32xf32, #tpu.memory_space<vmem>>, vector<1x8x32xf32>
    %152 = vector.shape_cast %151 : vector<1x8x32xf32> to vector<8x32xf32>
    %153 = vector.shape_cast %150 : vector<8x32xf32> to vector<1x8x32xf32>
    tpu.vector_store %arg14[%c0_41, %c0_42, %c0_43], %153 {strides = array<i32>} : memref<1x8x32xf32, #tpu.memory_space<vmem>>, vector<1x8x32xf32>,
    return
  }
  func.func @transform_0(%arg0: i32) -> (i32, i32, i32) {
    %c0_i32 = arith.constant 0 : i32
    %c0_i32_0 = arith.constant 0 : i32
    %c0_i32_1 = arith.constant 0 : i32
    return %arg0, %c0_i32, %c0_i32_0 : i32, i32, i32
  }
  func.func @transform_1(%arg0: i32) -> (i32, i32) {
    %c0_i32 = arith.constant 0 : i32
    %c0_i32_0 = arith.constant 0 : i32
    %c0_i32_1 = arith.constant 0 : i32
    return %c0_i32, %c0_i32_0 : i32, i32
  }
  func.func @transform_2(%arg0: i32) -> (i32, i32) {
    %c0_i32 = arith.constant 0 : i32
    %c0_i32_0 = arith.constant 0 : i32
    %c0_i32_1 = arith.constant 0 : i32
    return %c0_i32, %c0_i32_0 : i32, i32
  }
  func.func @transform_3(%arg0: i32) -> (i32, i32) {
    %c0_i32 = arith.constant 0 : i32
    %c0_i32_0 = arith.constant 0 : i32
    %c0_i32_1 = arith.constant 0 : i32
    return %c0_i32, %c0_i32_0 : i32, i32
  }
  func.func @transform_4(%arg0: i32) -> (i32, i32) {
    %c0_i32 = arith.constant 0 : i32
    %c0_i32_0 = arith.constant 0 : i32
    %c0_i32_1 = arith.constant 0 : i32
    return %c0_i32, %c0_i32_0 : i32, i32
  }
  func.func @transform_5(%arg0: i32) -> (i32, i32) {
    %c0_i32 = arith.constant 0 : i32
    %c0_i32_0 = arith.constant 0 : i32
    %c0_i32_1 = arith.constant 0 : i32
    return %c0_i32, %c0_i32_0 : i32, i32
  }
  func.func @transform_6(%arg0: i32) -> (i32, i32) {
    %c0_i32 = arith.constant 0 : i32
    %c0_i32_0 = arith.constant 0 : i32
    %c0_i32_1 = arith.constant 0 : i32
    return %c0_i32, %c0_i32_0 : i32, i32
  }
  func.func @transform_7(%arg0: i32) -> (i32, i32) {
    %c0_i32 = arith.constant 0 : i32
    %c0_i32_0 = arith.constant 0 : i32
    %c0_i32_1 = arith.constant 0 : i32
    return %c0_i32, %c0_i32_0 : i32, i32
  }
  func.func @transform_8(%arg0: i32) -> (i32, i32) {
    %c0_i32 = arith.constant 0 : i32
    %c0_i32_0 = arith.constant 0 : i32
    %c0_i32_1 = arith.constant 0 : i32
    return %c0_i32, %c0_i32_0 : i32, i32
  }
  func.func @transform_9(%arg0: i32) -> (i32, i32) {
    %c0_i32 = arith.constant 0 : i32
    %c0_i32_0 = arith.constant 0 : i32
    %c0_i32_1 = arith.constant 0 : i32
    return %c0_i32, %c0_i32_0 : i32, i32
  }
  func.func @transform_10(%arg0: i32) -> (i32, i32) {
    %c0_i32 = arith.constant 0 : i32
    %c0_i32_0 = arith.constant 0 : i32
    %c0_i32_1 = arith.constant 0 : i32
    return %c0_i32, %c0_i32_0 : i32, i32
  }
  func.func @transform_11(%arg0: i32) -> (i32, i32) {
    %c0_i32 = arith.constant 0 : i32
    %c0_i32_0 = arith.constant 0 : i32
    %c0_i32_1 = arith.constant 0 : i32
    return %c0_i32, %c0_i32_0 : i32, i32
  }
  func.func @transform_12(%arg0: i32) -> (i32, i32) {
    %c0_i32 = arith.constant 0 : i32
    %c0_i32_0 = arith.constant 0 : i32
    %c0_i32_1 = arith.constant 0 : i32
    return %c0_i32, %c0_i32_0 : i32, i32
  }
  func.func @transform_13(%arg0: i32) -> (i32, i32, i32) {
    %c0_i32 = arith.constant 0 : i32
    %c0_i32_0 = arith.constant 0 : i32
    %c0_i32_1 = arith.constant 0 : i32
    return %arg0, %c0_i32, %c0_i32_0 : i32, i32, i32
  }
}

</mosaic_0001>

<llo_original>
// kernel: tpu_custom_call.1
$region0: #{tpu_custom_call.1}
  #allocation0 [shape = 'u32[]', space=smem, size = 0x4, offset = 0x4, fixed_abs, tag = 'smem constant byte address 0x4 - core index']
  #allocation1 [shape = 'u32[144,128]{1,0:T(1,128)}', space=vmem, size = 0x12000, scoped, tag = 'internal scratch']
  %s0 = inlined_call_operand.vmem [shape: f32[2,8,32], index: 0, kind: input, shape index: {}]
  %s1 = inlined_call_operand.hbm [shape: f32[8,8], index: 1, kind: input, shape index: {}]
  %s2 = inlined_call_operand.hbm [shape: f32[8,8], index: 2, kind: input, shape index: {}]
  %s3 = inlined_call_operand.vmem [shape: f32[1,32], index: 3, kind: input, shape index: {}]
  %s4 = inlined_call_operand.vmem [shape: bf16[32,64], index: 4, kind: input, shape index: {}]
  %s5 = inlined_call_operand.vmem [shape: f32[1,64], index: 5, kind: input, shape index: {}]
  %s6 = inlined_call_operand.vmem [shape: bf16[32,32], index: 6, kind: input, shape index: {}]
  %s7 = inlined_call_operand.vmem [shape: f32[1,32], index: 7, kind: input, shape index: {}]
  %s8 = inlined_call_operand.vmem [shape: f32[1,32], index: 8, kind: input, shape index: {}]
  %s9 = inlined_call_operand.vmem [shape: bf16[32,256], index: 9, kind: input, shape index: {}]
  %s10 = inlined_call_operand.vmem [shape: f32[1,256], index: 10, kind: input, shape index: {}]
  %s11 = inlined_call_operand.vmem [shape: bf16[128,32], index: 11, kind: input, shape index: {}]
  %s12 = inlined_call_operand.vmem [shape: f32[1,32], index: 12, kind: input, shape index: {}]
  %s13 = inlined_call_operand.hbm [shape: f32[2,8,32], index: 13, kind: output, shape index: {}]
  %s14 = sld [smem:[#allocation0]]
  $region93: #{tpu_custom_call.1} parent=0
    _
  %s16 = ssub.s32 1, %s14
  %s17 = scalar_select 0, %s16, %s14
  $region1: #{tpu_custom_call.1} parent=0
    #allocation2 [shape = 'u8[4096]{0}', space=vmem, size = 0x1000, scoped, tag = 'input window, operand 1, single buffered']
    #allocation3 [shape = 's32[2]{0}', space=sflag, size = 0x8, scoped, tag = 'scoped memory for tpu_custom_call.1']
    #allocation4 [shape = 's32[2]{0}', space=sflag, size = 0x8, scoped, tag = 'scoped memory for tpu_custom_call.1']
    #allocation5 [shape = 'u8[4096]{0}', space=vmem, size = 0x1000, scoped, tag = 'input window, operand 2, single buffered']
    #allocation6 [shape = 's32[1]{0}', space=sflag, size = 0x4, scoped, tag = 'scoped memory for tpu_custom_call.1']
    #allocation7 [shape = 'u8[8192]{0}', space=vmem, size = 0x2000, scoped, tag = 'output window, operand 0']
    %18 = vsyncpa [#allocation3], 0
    %19 = vsyncpa [#allocation6], 0
    %20 = vsyncpa [#allocation4], 0
    %s21 = scalar_lea.sflag [#allocation4], 1
    %22 = vsyncpa %s21, 0
    loop: start=0, step=1, limit=4
    $region2: #{tpu_custom_call.1} parent=1 // loop_pre_header
      _
    $region3: #{tpu_custom_call.1} parent=1 // loop_header
      %s24 = sphi 0, %s28
      %p25 = scmp.ge.s32.totalorder %s24, 4
      %s34 = sphi 0, %s36
      %s37 = sphi 0, %s34
      %s38 = sphi 0, %s37
      %s54 = sphi 0, %s38
      %s58 = sphi 0, %s58
      %s60 = sphi 0, %s58
      %s61 = sphi 0, %s60
      %s75 = sphi 0, %s61
      %s79 = sphi 0, %s79
      %s81 = sphi 0, %s79
      %s82 = sphi 0, %s81
      %s96 = sphi 0, %s82
      %s100 = sphi 0, %s100
      %s102 = sphi 0, %s100
      %s103 = sphi 0, %s102
      %s117 = sphi 0, %s103
      %s121 = sphi 0, %s121
      %s123 = sphi 0, %s121
      %s124 = sphi 0, %s123
      %s138 = sphi 0, %s124
      %s142 = sphi 0, %s142
      %s144 = sphi 0, %s142
      %s145 = sphi 0, %s144
      %s159 = sphi 0, %s145
      %s163 = sphi 0, %s163
      %s165 = sphi 0, %s163
      %s166 = sphi 0, %s165
      %s180 = sphi 0, %s166
      %s184 = sphi 0, %s184
      %s186 = sphi 0, %s184
      %s187 = sphi 0, %s186
      %s201 = sphi 0, %s187
      %s205 = sphi 0, %s205
      %s207 = sphi 0, %s205
      %s208 = sphi 0, %s207
      %s222 = sphi 0, %s208
      %s226 = sphi 0, %s226
      %s228 = sphi 0, %s226
      %s229 = sphi 0, %s228
      %s243 = sphi 0, %s229
      %s247 = sphi 0, %s247
      %s249 = sphi 0, %s247
      %s250 = sphi 0, %s249
      %s264 = sphi 0, %s250
      %s268 = sphi 0, %s268
      %s270 = sphi 0, %s268
      %s271 = sphi 0, %s270
      %s285 = sphi 0, %s271
      %s289 = sphi 0, %s289
      %s291 = sphi 0, %s289
      %s292 = sphi 0, %s291
      %s306 = sphi 0, %s292
      %s312 = sphi 0, %s314
      %s315 = sphi 0, %s312
      %s316 = sphi 0, %s315
      %s332 = sphi 0, %s316
    $region4: #{tpu_custom_call.1} parent=1 // loop_header_branch
      %27 = sbr.rel (%p25) target = $region8
    $region5: #{tpu_custom_call.1} parent=1 // loop_body
      %s29 = ssub.s32 %s24, 1
      %s30 = ssub.s32 %s24, 2
      %s31 = sadd.s32 %s24, 1
      %s32 = ssub.s32 %s24, %s31
      %p33 = scmp.eq.s32.totalorder %s32, 0
      %s35 = sadd.s32 %s34, 1
      %s36 = scalar_select %p33, %s34, %s35
      %p39 = pneg %p33
      %p40 = scmp.eq.s32.totalorder %s24, 1
      %p41 = por %p39, %p40
      %p42 = scmp.ne.s32.totalorder %s34, %s37
      %p43 = scmp.eq.s32.totalorder %s24, 0
      %p44 = por %p42, %p43
      %p45 = scmp.ne.s32.totalorder %s34, %s37
      %p46 = scmp.eq.s32.totalorder %s29, 1
      %p47 = por %p45, %p46
      %p48 = scmp.ne.s32.totalorder %s37, %s38
      %p49 = scmp.eq.s32.totalorder %s29, 0
      %p50 = por %p48, %p49
      %p51 = scmp.ne.s32.totalorder %s37, %s38
      %p52 = scmp.eq.s32.totalorder %s30, 1
      %p53 = por %p51, %p52
      %p55 = scmp.ne.s32.totalorder %s38, %s54
      %p56 = scmp.eq.s32.totalorder %s30, 0
      %p57 = por %p55, %p56
      %s59 = sadd.s32 %s58, 1
      %p62 = scmp.eq.s32.totalorder %s24, 1
      %p63 = scmp.ne.s32.totalorder %s58, %s60
      %p64 = scmp.eq.s32.totalorder %s24, 0
      %p65 = por %p63, %p64
      %p66 = scmp.ne.s32.totalorder %s58, %s60
      %p67 = scmp.eq.s32.totalorder %s29, 1
      %p68 = por %p66, %p67
      %p69 = scmp.ne.s32.totalorder %s60, %s61
      %p70 = scmp.eq.s32.totalorder %s29, 0
      %p71 = por %p69, %p70
      %p72 = scmp.ne.s32.totalorder %s60, %s61
      %p73 = scmp.eq.s32.totalorder %s30, 1
      %p74 = por %p72, %p73
      %p76 = scmp.ne.s32.totalorder %s61, %s75
      %p77 = scmp.eq.s32.totalorder %s30, 0
      %p78 = por %p76, %p77
      %s80 = sadd.s32 %s79, 1
      %p83 = scmp.eq.s32.totalorder %s24, 1
      %p84 = scmp.ne.s32.totalorder %s79, %s81
      %p85 = scmp.eq.s32.totalorder %s24, 0
      %p86 = por %p84, %p85
      %p87 = scmp.ne.s32.totalorder %s79, %s81
      %p88 = scmp.eq.s32.totalorder %s29, 1
      %p89 = por %p87, %p88
      %p90 = scmp.ne.s32.totalorder %s81, %s82
      %p91 = scmp.eq.s32.totalorder %s29, 0
      %p92 = por %p90, %p91
      %p93 = scmp.ne.s32.totalorder %s81, %s82
      %p94 = scmp.eq.s32.totalorder %s30, 1
      %p95 = por %p93, %p94
      %p97 = scmp.ne.s32.totalorder %s82, %s96
      %p98 = scmp.eq.s32.totalorder %s30, 0
      %p99 = por %p97, %p98
      %s101 = sadd.s32 %s100, 1
      %p104 = scmp.eq.s32.totalorder %s24, 1
      %p105 = scmp.ne.s32.totalorder %s100, %s102
      %p106 = scmp.eq.s32.totalorder %s24, 0
      %p107 = por %p105, %p106
      %p108 = scmp.ne.s32.totalorder %s100, %s102
      %p109 = scmp.eq.s32.totalorder %s29, 1
      %p110 = por %p108, %p109
      %p111 = scmp.ne.s32.totalorder %s102, %s103
      %p112 = scmp.eq.s32.totalorder %s29, 0
      %p113 = por %p111, %p112
      %p114 = scmp.ne.s32.totalorder %s102, %s103
      %p115 = scmp.eq.s32.totalorder %s30, 1
      %p116 = por %p114, %p115
      %p118 = scmp.ne.s32.totalorder %s103, %s117
      %p119 = scmp.eq.s32.totalorder %s30, 0
      %p120 = por %p118, %p119
      %s122 = sadd.s32 %s121, 1
      %p125 = scmp.eq.s32.totalorder %s24, 1
      %p126 = scmp.ne.s32.totalorder %s121, %s123
      %p127 = scmp.eq.s32.totalorder %s24, 0
      %p128 = por %p126, %p127
      %p129 = scmp.ne.s32.totalorder %s121, %s123
      %p130 = scmp.eq.s32.totalorder %s29, 1
      %p131 = por %p129, %p130
      %p132 = scmp.ne.s32.totalorder %s123, %s124
      %p133 = scmp.eq.s32.totalorder %s29, 0
      %p134 = por %p132, %p133
      %p135 = scmp.ne.s32.totalorder %s123, %s124
      %p136 = scmp.eq.s32.totalorder %s30, 1
      %p137 = por %p135, %p136
      %p139 = scmp.ne.s32.totalorder %s124, %s138
      %p140 = scmp.eq.s32.totalorder %s30, 0
      %p141 = por %p139, %p140
      %s143 = sadd.s32 %s142, 1
      %p146 = scmp.eq.s32.totalorder %s24, 1
      %p147 = scmp.ne.s32.totalorder %s142, %s144
      %p148 = scmp.eq.s32.totalorder %s24, 0
      %p149 = por %p147, %p148
      %p150 = scmp.ne.s32.totalorder %s142, %s144
      %p151 = scmp.eq.s32.totalorder %s29, 1
      %p152 = por %p150, %p151
      %p153 = scmp.ne.s32.totalorder %s144, %s145
      %p154 = scmp.eq.s32.totalorder %s29, 0
      %p155 = por %p153, %p154
      %p156 = scmp.ne.s32.totalorder %s144, %s145
      %p157 = scmp.eq.s32.totalorder %s30, 1
      %p158 = por %p156, %p157
      %p160 = scmp.ne.s32.totalorder %s145, %s159
      %p161 = scmp.eq.s32.totalorder %s30, 0
      %p162 = por %p160, %p161
      %s164 = sadd.s32 %s163, 1
      %p167 = scmp.eq.s32.totalorder %s24, 1
      %p168 = scmp.ne.s32.totalorder %s163, %s165
      %p169 = scmp.eq.s32.totalorder %s24, 0
      %p170 = por %p168, %p169
      %p171 = scmp.ne.s32.totalorder %s163, %s165
      %p172 = scmp.eq.s32.totalorder %s29, 1
      %p173 = por %p171, %p172
      %p174 = scmp.ne.s32.totalorder %s165, %s166
      %p175 = scmp.eq.s32.totalorder %s29, 0
      %p176 = por %p174, %p175
      %p177 = scmp.ne.s32.totalorder %s165, %s166
      %p178 = scmp.eq.s32.totalorder %s30, 1
      %p179 = por %p177, %p178
      %p181 = scmp.ne.s32.totalorder %s166, %s180
      %p182 = scmp.eq.s32.totalorder %s30, 0
      %p183 = por %p181, %p182
      %s185 = sadd.s32 %s184, 1
      %p188 = scmp.eq.s32.totalorder %s24, 1
      %p189 = scmp.ne.s32.totalorder %s184, %s186
      %p190 = scmp.eq.s32.totalorder %s24, 0
      %p191 = por %p189, %p190
      %p192 = scmp.ne.s32.totalorder %s184, %s186
      %p193 = scmp.eq.s32.totalorder %s29, 1
      %p194 = por %p192, %p193
      %p195 = scmp.ne.s32.totalorder %s186, %s187
      %p196 = scmp.eq.s32.totalorder %s29, 0
      %p197 = por %p195, %p196
      %p198 = scmp.ne.s32.totalorder %s186, %s187
      %p199 = scmp.eq.s32.totalorder %s30, 1
      %p200 = por %p198, %p199
      %p202 = scmp.ne.s32.totalorder %s187, %s201
      %p203 = scmp.eq.s32.totalorder %s30, 0
      %p204 = por %p202, %p203
      %s206 = sadd.s32 %s205, 1
      %p209 = scmp.eq.s32.totalorder %s24, 1
      %p210 = scmp.ne.s32.totalorder %s205, %s207
      %p211 = scmp.eq.s32.totalorder %s24, 0
      %p212 = por %p210, %p211
      %p213 = scmp.ne.s32.totalorder %s205, %s207
      %p214 = scmp.eq.s32.totalorder %s29, 1
      %p215 = por %p213, %p214
      %p216 = scmp.ne.s32.totalorder %s207, %s208
      %p217 = scmp.eq.s32.totalorder %s29, 0
      %p218 = por %p216, %p217
      %p219 = scmp.ne.s32.totalorder %s207, %s208
      %p220 = scmp.eq.s32.totalorder %s30, 1
      %p221 = por %p219, %p220
      %p223 = scmp.ne.s32.totalorder %s208, %s222
      %p224 = scmp.eq.s32.totalorder %s30, 0
      %p225 = por %p223, %p224
      %s227 = sadd.s32 %s226, 1
      %p230 = scmp.eq.s32.totalorder %s24, 1
      %p231 = scmp.ne.s32.totalorder %s226, %s228
      %p232 = scmp.eq.s32.totalorder %s24, 0
      %p233 = por %p231, %p232
      %p234 = scmp.ne.s32.totalorder %s226, %s228
      %p235 = scmp.eq.s32.totalorder %s29, 1
      %p236 = por %p234, %p235
      %p237 = scmp.ne.s32.totalorder %s228, %s229
      %p238 = scmp.eq.s32.totalorder %s29, 0
      %p239 = por %p237, %p238
      %p240 = scmp.ne.s32.totalorder %s228, %s229
      %p241 = scmp.eq.s32.totalorder %s30, 1
      %p242 = por %p240, %p241
      %p244 = scmp.ne.s32.totalorder %s229, %s243
      %p245 = scmp.eq.s32.totalorder %s30, 0
      %p246 = por %p244, %p245
      %s248 = sadd.s32 %s247, 1
      %p251 = scmp.eq.s32.totalorder %s24, 1
      %p252 = scmp.ne.s32.totalorder %s247, %s249
      %p253 = scmp.eq.s32.totalorder %s24, 0
      %p254 = por %p252, %p253
      %p255 = scmp.ne.s32.totalorder %s247, %s249
      %p256 = scmp.eq.s32.totalorder %s29, 1
      %p257 = por %p255, %p256
      %p258 = scmp.ne.s32.totalorder %s249, %s250
      %p259 = scmp.eq.s32.totalorder %s29, 0
      %p260 = por %p258, %p259
      %p261 = scmp.ne.s32.totalorder %s249, %s250
      %p262 = scmp.eq.s32.totalorder %s30, 1
      %p263 = por %p261, %p262
      %p265 = scmp.ne.s32.totalorder %s250, %s264
      %p266 = scmp.eq.s32.totalorder %s30, 0
      %p267 = por %p265, %p266
      %s269 = sadd.s32 %s268, 1
      %p272 = scmp.eq.s32.totalorder %s24, 1
      %p273 = scmp.ne.s32.totalorder %s268, %s270
      %p274 = scmp.eq.s32.totalorder %s24, 0
      %p275 = por %p273, %p274
      %p276 = scmp.ne.s32.totalorder %s268, %s270
      %p277 = scmp.eq.s32.totalorder %s29, 1
      %p278 = por %p276, %p277
      %p279 = scmp.ne.s32.totalorder %s270, %s271
      %p280 = scmp.eq.s32.totalorder %s29, 0
      %p281 = por %p279, %p280
      %p282 = scmp.ne.s32.totalorder %s270, %s271
      %p283 = scmp.eq.s32.totalorder %s30, 1
      %p284 = por %p282, %p283
      %p286 = scmp.ne.s32.totalorder %s271, %s285
      %p287 = scmp.eq.s32.totalorder %s30, 0
      %p288 = por %p286, %p287
      %s290 = sadd.s32 %s289, 1
      %p293 = scmp.eq.s32.totalorder %s24, 1
      %p294 = scmp.ne.s32.totalorder %s289, %s291
      %p295 = scmp.eq.s32.totalorder %s24, 0
      %p296 = por %p294, %p295
      %p297 = scmp.ne.s32.totalorder %s289, %s291
      %p298 = scmp.eq.s32.totalorder %s29, 1
      %p299 = por %p297, %p298
      %p300 = scmp.ne.s32.totalorder %s291, %s292
      %p301 = scmp.eq.s32.totalorder %s29, 0
      %p302 = por %p300, %p301
      %p303 = scmp.ne.s32.totalorder %s291, %s292
      %p304 = scmp.eq.s32.totalorder %s30, 1
      %p305 = por %p303, %p304
      %p307 = scmp.ne.s32.totalorder %s292, %s306
      %p308 = scmp.eq.s32.totalorder %s30, 0
      %p309 = por %p307, %p308
      %s310 = ssub.s32 %s24, %s31
      %p311 = scmp.eq.s32.totalorder %s310, 0
      %s313 = sadd.s32 %s312, 1
      %s314 = scalar_select %p311, %s312, %s313
      %p317 = pneg %p311
      %p318 = scmp.eq.s32.totalorder %s24, 1
      %p319 = por %p317, %p318
      %p320 = scmp.ne.s32.totalorder %s312, %s315
      %p321 = scmp.eq.s32.totalorder %s24, 0
      %p322 = por %p320, %p321
      %p323 = scmp.ne.s32.totalorder %s312, %s315
      %p324 = scmp.eq.s32.totalorder %s29, 1
      %p325 = por %p323, %p324
      %p326 = scmp.ne.s32.totalorder %s315, %s316
      %p327 = scmp.eq.s32.totalorder %s29, 0
      %p328 = por %p326, %p327
      %p329 = scmp.ne.s32.totalorder %s315, %s316
      %p330 = scmp.eq.s32.totalorder %s30, 1
      %p331 = por %p329, %p330
      %p333 = scmp.ne.s32.totalorder %s316, %s332
      %p334 = scmp.eq.s32.totalorder %s30, 0
      %p335 = por %p333, %p334
      %p336 = scmp.le.s32.totalorder 1, %s24
      %p337 = scmp.lt.s32.totalorder %s24, 3
      %p338 = pnand %p336, %p337
      %p339 = pneg %p338
      // Predicated region
      $region9: #{tpu_custom_call.1} parent=5 // pred_check
        _
      $region10: #{tpu_custom_call.1} parent=5 // pred_check_branch
        %341 = sbr.rel (%p338) target = $region12
      $region11: #{tpu_custom_call.1} parent=5 // pred_region
        %s342 = ssub.s32 %s24, 1
        // Predicated region
        $region13: #{tpu_custom_call.1} parent=11 // pred_check
          %p343 = pneg %p71
        $region14: #{tpu_custom_call.1} parent=11 // pred_check_branch
          %345 = sbr.rel (%p343) target = $region16
        $region15: #{tpu_custom_call.1} parent=11 // pred_region
          %s347 = ssub.s32 128, 128
          %348 = vsyncadd [#allocation3], %s347
          %s350 = sshll.u32 [#allocation2], 4
          %s351 = int_to_ptr.vmem [resolvable:$true] %s350
          %353 = dma.hbm_to_vmem [thread:$0]  %s1, 128, %s351, [#allocation3]
        $region16: #{tpu_custom_call.1} parent=11 // pred_fallthru
          _
        // Predicated region
        $region17: #{tpu_custom_call.1} parent=11 // pred_check
          %p354 = pneg %p92
        $region18: #{tpu_custom_call.1} parent=11 // pred_check_branch
          %356 = sbr.rel (%p354) target = $region20
        $region19: #{tpu_custom_call.1} parent=11 // pred_region
          %s358 = ssub.s32 128, 128
          %359 = vsyncadd [#allocation6], %s358
          %s361 = sshll.u32 [#allocation5], 4
          %s362 = int_to_ptr.vmem [resolvable:$true] %s361
          %364 = dma.hbm_to_vmem [thread:$0]  %s2, 128, %s362, [#allocation6]
        $region20: #{tpu_custom_call.1} parent=11 // pred_fallthru
          _
        // Predicated region
        $region21: #{tpu_custom_call.1} parent=11 // pred_check
          %p365 = pneg %p113
        $region22: #{tpu_custom_call.1} parent=11 // pred_check_branch
          %367 = sbr.rel (%p365) target = $region24
        $region23: #{tpu_custom_call.1} parent=11 // pred_region
          _
        $region24: #{tpu_custom_call.1} parent=11 // pred_fallthru
          _
        // Predicated region
        $region25: #{tpu_custom_call.1} parent=11 // pred_check
          %p368 = pneg %p134
        $region26: #{tpu_custom_call.1} parent=11 // pred_check_branch
          %370 = sbr.rel (%p368) target = $region28
        $region27: #{tpu_custom_call.1} parent=11 // pred_region
          _
        $region28: #{tpu_custom_call.1} parent=11 // pred_fallthru
          _
        // Predicated region
        $region29: #{tpu_custom_call.1} parent=11 // pred_check
          %p371 = pneg %p155
        $region30: #{tpu_custom_call.1} parent=11 // pred_check_branch
          %373 = sbr.rel (%p371) target = $region32
        $region31: #{tpu_custom_call.1} parent=11 // pred_region
          _
        $region32: #{tpu_custom_call.1} parent=11 // pred_fallthru
          _
        // Predicated region
        $region33: #{tpu_custom_call.1} parent=11 // pred_check
          %p374 = pneg %p176
        $region34: #{tpu_custom_call.1} parent=11 // pred_check_branch
          %376 = sbr.rel (%p374) target = $region36
        $region35: #{tpu_custom_call.1} parent=11 // pred_region
          _
        $region36: #{tpu_custom_call.1} parent=11 // pred_fallthru
          _
        // Predicated region
        $region37: #{tpu_custom_call.1} parent=11 // pred_check
          %p377 = pneg %p197
        $region38: #{tpu_custom_call.1} parent=11 // pred_check_branch
          %379 = sbr.rel (%p377) target = $region40
        $region39: #{tpu_custom_call.1} parent=11 // pred_region
          _
        $region40: #{tpu_custom_call.1} parent=11 // pred_fallthru
          _
        // Predicated region
        $region41: #{tpu_custom_call.1} parent=11 // pred_check
          %p380 = pneg %p218
        $region42: #{tpu_custom_call.1} parent=11 // pred_check_branch
          %382 = sbr.rel (%p380) target = $region44
        $region43: #{tpu_custom_call.1} parent=11 // pred_region
          _
        $region44: #{tpu_custom_call.1} parent=11 // pred_fallthru
          _
        // Predicated region
        $region45: #{tpu_custom_call.1} parent=11 // pred_check
          %p383 = pneg %p239
        $region46: #{tpu_custom_call.1} parent=11 // pred_check_branch
          %385 = sbr.rel (%p383) target = $region48
        $region47: #{tpu_custom_call.1} parent=11 // pred_region
          _
        $region48: #{tpu_custom_call.1} parent=11 // pred_fallthru
          _
        // Predicated region
        $region49: #{tpu_custom_call.1} parent=11 // pred_check
          %p386 = pneg %p260
        $region50: #{tpu_custom_call.1} parent=11 // pred_check_branch
          %388 = sbr.rel (%p386) target = $region52
        $region51: #{tpu_custom_call.1} parent=11 // pred_region
          _
        $region52: #{tpu_custom_call.1} parent=11 // pred_fallthru
          _
        // Predicated region
        $region53: #{tpu_custom_call.1} parent=11 // pred_check
          %p389 = pneg %p281
        $region54: #{tpu_custom_call.1} parent=11 // pred_check_branch
          %391 = sbr.rel (%p389) target = $region56
        $region55: #{tpu_custom_call.1} parent=11 // pred_region
          _
        $region56: #{tpu_custom_call.1} parent=11 // pred_fallthru
          _
        // Predicated region
        $region57: #{tpu_custom_call.1} parent=11 // pred_check
          %p392 = pneg %p302
        $region58: #{tpu_custom_call.1} parent=11 // pred_check_branch
          %394 = sbr.rel (%p392) target = $region60
        $region59: #{tpu_custom_call.1} parent=11 // pred_region
          _
        $region60: #{tpu_custom_call.1} parent=11 // pred_fallthru
          _
      $region12: #{tpu_custom_call.1} parent=5 // pred_fallthru
        _
      %p395 = scmp.lt.s32.totalorder %s24, 2
      // Predicated region
      $region61: #{tpu_custom_call.1} parent=5 // pred_check
        %p396 = pneg %p395
      $region62: #{tpu_custom_call.1} parent=5 // pred_check_branch
        %398 = sbr.rel (%p396) target = $region64
      $region63: #{tpu_custom_call.1} parent=5 // pred_region
        // Predicated region
        $region65: #{tpu_custom_call.1} parent=63 // pred_check
          %p399 = pneg %p44
        $region66: #{tpu_custom_call.1} parent=63 // pred_check_branch
          %401 = sbr.rel (%p399) target = $region68
        $region67: #{tpu_custom_call.1} parent=63 // pred_region
          %p402 = scmp.lt.s32.totalorder %s24, 1
          %s403 = scalar_select %p402, %s24, 1
          %s404 = smul.addr %s403, 8
          %s405 = scalar_lea.vmem %s0, %s404
        $region68: #{tpu_custom_call.1} parent=63 // pred_fallthru
          _
      $region64: #{tpu_custom_call.1} parent=5 // pred_fallthru
        _
      %p406 = scmp.le.s32.totalorder 1, %s24
      %p407 = scmp.lt.s32.totalorder %s24, 3
      %p408 = pnand %p406, %p407
      %p409 = pneg %p408
      // Predicated region
      $region69: #{tpu_custom_call.1} parent=5 // pred_check
        _
      $region70: #{tpu_custom_call.1} parent=5 // pred_check_branch
        %411 = sbr.rel (%p408) target = $region72
      $region71: #{tpu_custom_call.1} parent=5 // pred_region
        %s412 = ssub.s32 %s24, 1
        // Predicated region
        $region73: #{tpu_custom_call.1} parent=71 // pred_check
          %p413 = pneg %p71
        $region74: #{tpu_custom_call.1} parent=71 // pred_check_branch
          %415 = sbr.rel (%p413) target = $region76
        $region75: #{tpu_custom_call.1} parent=71 // pred_region
          %416 = dma.done [#allocation3], 128
        $region76: #{tpu_custom_call.1} parent=71 // pred_fallthru
          _
        // Predicated region
        $region77: #{tpu_custom_call.1} parent=71 // pred_check
          %p417 = pneg %p92
        $region78: #{tpu_custom_call.1} parent=71 // pred_check_branch
          %419 = sbr.rel (%p417) target = $region80
        $region79: #{tpu_custom_call.1} parent=71 // pred_region
          %420 = dma.done [#allocation6], 128
        $region80: #{tpu_custom_call.1} parent=71 // pred_fallthru
          _
        %p421 = scmp.lt.s32.totalorder %s29, 1
        %s422 = scalar_select %p421, %s29, 1
        %s423 = smul.addr %s422, 8
        %s424 = scalar_lea.vmem %s0, %s423
        %p425 = pneg %p50
        %p426 = pneg %p47
        %p427 = pneg %p71
        %p428 = pneg %p68
        %p429 = pneg %p92
        %p430 = pneg %p89
        %p431 = pneg %p113
        %p432 = pneg %p110
        %p433 = pneg %p134
        %p434 = pneg %p131
        %p435 = pneg %p155
        %p436 = pneg %p152
        %p437 = pneg %p176
        %p438 = pneg %p173
        %p439 = pneg %p197
        %p440 = pneg %p194
        %p441 = pneg %p218
        %p442 = pneg %p215
        %p443 = pneg %p239
        %p444 = pneg %p236
        %p445 = pneg %p260
        %p446 = pneg %p257
        %p447 = pneg %p281
        %p448 = pneg %p278
        %p449 = pneg %p302
        %p450 = pneg %p299
        %p451 = pneg %p328
        %p452 = pneg %p325
        %s453 = sand.u32 %s315, 1
        %s454 = scalar_lea.sflag [#allocation4], %s453
        %s455 = sand.u32 %s315, 1
        %s456 = smul.addr %s455, 8
        %s457 = scalar_lea.vmem [#allocation7], %s456
        %p458 = scmp.lt.s32.totalorder %s29, 1
        %s459 = scalar_select %p458, %s29, 1
        %s460 = smul.addr %s459, 8
        %s461 = scalar_lea.vmem %s0, %s460
        %v463 = vld [vmem:[%s461] sm:$0xff]
        %v464 = vld [vmem:[#allocation2] sm:$0xff]
        %v465 = vld [vmem:[#allocation5] sm:$0xff]
        %v466 = vld [vmem:[%s3] sm:$0x1]
        %v467 = vmul.f32 %v463, %v463
        %vm468 = vcmask 261120
        %v469 = vsel %vm468, %v467, 0.0
        %470 = vadd.xlane.f32.xlu0 %v469
        %v471 = vpop.xlane.xlu0 %470
        %v472 = vrcp.pop 32.0
        %v473 = vmul.f32 %v471, %v472
        %v474 = vadd.f32 %v473, 1e-06
        %v475 = vrsqrt.pop %v474
        %v476 = vmul.f32 %v463, %v475
        %v478 = vlaneseq
        %v479 = vshrl.u32 %v478, 7
        %v480 = vsub.s32 0, %v479
        %v481 = vrot.slane %v466, %v480
        %v483 = vmul.f32 %v476, %v481
        %v484 = vpack.c.bf16 %v483, %v483
        %v485 = vld [vmem:[%s4] sm:$0xf]
        %v486 = vld [vmem:[%s4 + $0x4] sm:$0xf]
        %v487 = vld [vmem:[%s4 + $0x8] sm:$0xf]
        %v488 = vld [vmem:[%s4 + $0xc] sm:$0xf]
        %v489 = vld [vmem:[%s5] sm:$0x1]
        %v491 = vlaneseq
        %v492 = vshrl.u32 %v491, 7
        %v493 = vsub.s32 0, %v492
        %v494 = vrot.slane %v489, %v493
        %v500 = vunpack.c.l.b16 %v485
        %v501 = vunpack.c.l.b16 %v486
        %v502 = vunpack.c.l.b16 %v487
        %v503 = vunpack.c.l.b16 %v488
        %v504 = vpack.c.b16 %v501, %v500
        %v505 = vpack.c.b16 %v503, %v502
        %v509 = vsel %vm468, %v484, 0
        %511 = vmatprep.subr.bf16.mxu0 0
        %512 = vmatpush1.bf16.msra.mxu0 %v504
        %513 = vmatprep.subr.bf16.mxu0 0
        %514 = vmatpush1.bf16.msra.mxu0 %v505
        %515 = vmatprep.subr.bf16.mxu0 0
        %516 = vmatpush1.bf16.msra.mxu0 0
        %517 = vmatprep.subr.bf16.mxu0 0
        %518 = vmatpush1.bf16.msra.mxu0 0
        %519 = vmatprep.subr.bf16.mxu0 0
        %520 = vmatpush1.bf16.msra.mxu0 0
        %521 = vmatprep.subr.bf16.mxu0 0
        %522 = vmatpush1.bf16.msra.mxu0 0
        %523 = vmatprep.subr.bf16.mxu0 0
        %524 = vmatpush1.bf16.msra.mxu0 0
        %525 = vmatprep.subr.bf16.mxu0 0
        %526 = vmatpush1.bf16.msra.mxu0 0
        %527 = vmatprep.subr.bf16.mxu0 0
        %528 = vmatpush1.bf16.msra.mxu0 0
        %529 = vmatprep.subr.bf16.mxu0 0
        %530 = vmatpush1.bf16.msra.mxu0 0
        %531 = vmatprep.subr.bf16.mxu0 0
        %532 = vmatpush1.bf16.msra.mxu0 0
        %533 = vmatprep.subr.bf16.mxu0 0
        %534 = vmatpush1.bf16.msra.mxu0 0
        %535 = vmatprep.subr.bf16.mxu0 0
        %536 = vmatpush1.bf16.msra.mxu0 0
        %537 = vmatprep.subr.bf16.mxu0 0
        %538 = vmatpush1.bf16.msra.mxu0 0
        %539 = vmatprep.subr.bf16.mxu0 0
        %540 = vmatpush1.bf16.msra.mxu0 0
        %541 = vmatprep.subr.bf16.mxu0 0
        %542 = vmatpush1.bf16.msra.mxu0 0
        %543 = vmatprep.mubr.bf16.mxu0 0
        %544 = vmatmul.mubr.bf16.gmra.mrb[0].mxu0 %v509
        %v545 = vpop.f32.mrb[0].mxu0
        %v546 = vadd.f32 %v494, %v545
        %v547 = vpop.f32.mrb[0].mxu0
        %v548 = vpop.f32.mrb[0].mxu0
        %v549 = vpop.f32.mrb[0].mxu0
        %550 = vdwg.mxu0
        %552 = vrot.lane.b32.xlu0 %v546, 120
        %v553 = vpop.permute.xlu0 %552
        %555 = vrot.lane.b32.xlu0 %v546, 112
        %v556 = vpop.permute.xlu0 %555
        %558 = vrot.lane.b32.xlu0 %v546, 104
        %v559 = vpop.permute.xlu0 %558
        %561 = vrot.lane.b32.xlu0 %v546, 124
        %v562 = vpop.permute.xlu0 %561
        %563 = vrot.lane.b32.xlu0 %v553, 124
        %v564 = vpop.permute.xlu0 %563
        %565 = vrot.lane.b32.xlu0 %v556, 124
        %v566 = vpop.permute.xlu0 %565
        %567 = vrot.lane.b32.xlu0 %v559, 124
        %v568 = vpop.permute.xlu0 %567
        %573 = vrot.lane.b32.xlu0 %v546, 4
        %v574 = vpop.permute.xlu0 %573
        %575 = vrot.lane.b32.xlu0 %v553, 4
        %v576 = vpop.permute.xlu0 %575
        %577 = vrot.lane.b32.xlu0 %v556, 4
        %v578 = vpop.permute.xlu0 %577
        %579 = vrot.lane.b32.xlu0 %v559, 4
        %v580 = vpop.permute.xlu0 %579
        %vm585 = vcmask 31744
        %v586 = vsel %vm585, %v562, %v574
        %v587 = vsel %vm585, %v564, %v576
        %v588 = vsel %vm585, %v566, %v578
        %v589 = vsel %vm585, %v568, %v580
        %v590 = vmul.f32 %v546, %v464
        %v591 = vmul.f32 %v553, %v464
        %v592 = vmul.f32 %v556, %v464
        %v593 = vmul.f32 %v559, %v464
        %v594 = vmul.f32 %v586, %v465
        %v595 = vmul.f32 %v587, %v465
        %v596 = vmul.f32 %v588, %v465
        %v597 = vmul.f32 %v589, %v465
        %v598 = vadd.f32 %v590, %v594
        %v599 = vadd.f32 %v591, %v595
        %v600 = vadd.f32 %v592, %v596
        %v601 = vadd.f32 %v593, %v597
        %602 = vrot.lane.b32.xlu0 %v546, 92
        %v603 = vpop.permute.xlu0 %602
        %604 = vrot.lane.b32.xlu0 %v553, 92
        %v605 = vpop.permute.xlu0 %604
        %608 = vrot.lane.b32.xlu0 %v546, 100
        %v609 = vpop.permute.xlu0 %608
        %610 = vrot.lane.b32.xlu0 %v553, 100
        %v611 = vpop.permute.xlu0 %610
        %v614 = vsel %vm585, %v603, %v609
        %v615 = vsel %vm585, %v605, %v611
        %617 = vrot.lane.b32.xlu0 %v464, 32
        %v618 = vpop.permute.xlu0 %617
        %v620 = vmul.f32 %v546, %v618
        %v621 = vmul.f32 %v553, %v618
        %v622 = vmul.f32 %v614, %v465
        %v623 = vmul.f32 %v615, %v465
        %626 = vrot.lane.b32.xlu0 %v622, 32
        %v627 = vpop.permute.xlu0 %626
        %628 = vrot.lane.b32.xlu0 %v623, 32
        %v629 = vpop.permute.xlu0 %628
        %v632 = vadd.f32 %v620, %v627
        %v633 = vadd.f32 %v621, %v629
        %v634 = vlaneseq
        %v635 = vshrl.u32 %v634, 7
        %v636 = vlaneseq
        %v637 = vand.u32 %v636, 127
        %vm638 = vcmp.le.s32.totalorder %v637, %v635
        %v639 = vsub.s32 %v635, 4
        %vm640 = vcmp.gt.s32.totalorder %v637, %v639
        %vm641 = vmand %vm638, %vm640
        %v642 = vpack.c.bf16 %v598, %v598
        %v643 = vpack.c.bf16 %v599, %v599
        %v644 = vpack.c.bf16 %v600, %v600
        %v645 = vpack.c.bf16 %v601, %v601
        %v646 = vpack.c.bf16 %v632, %v632
        %v647 = vpack.c.bf16 %v633, %v633
        %649 = vrot.lane.b32.xlu0 %v646, 96
        %v650 = vpop.permute.xlu0 %649
        %vm651 = vcmask 64512
        %v653 = vsel %vm651, %v642, 0
        %v656 = vsel %vm651, %v650, 0
        %658 = vmatprep.subr.bf16.mxu0 0
        %659 = vmatpush1.bf16.xpose.msra.mxu0 %v656
        %660 = vmatprep.subr.bf16.mxu0 0
        %661 = vmatpush1.bf16.xpose.msra.mxu0 0
        %662 = vmatprep.subr.bf16.mxu0 0
        %663 = vmatpush1.bf16.xpose.msra.mxu0 0
        %664 = vmatprep.subr.bf16.mxu0 0
        %665 = vmatpush1.bf16.xpose.msra.mxu0 0
        %666 = vmatprep.subr.bf16.mxu0 0
        %667 = vmatpush1.bf16.xpose.msra.mxu0 0
        %668 = vmatprep.subr.bf16.mxu0 0
        %669 = vmatpush1.bf16.xpose.msra.mxu0 0
        %670 = vmatprep.subr.bf16.mxu0 0
        %671 = vmatpush1.bf16.xpose.msra.mxu0 0
        %672 = vmatprep.subr.bf16.mxu0 0
        %673 = vmatpush1.bf16.xpose.msra.mxu0 0
        %674 = vmatprep.subr.bf16.mxu0 0
        %675 = vmatpush1.bf16.xpose.msra.mxu0 0
        %676 = vmatprep.subr.bf16.mxu0 0
        %677 = vmatpush1.bf16.xpose.msra.mxu0 0
        %678 = vmatprep.subr.bf16.mxu0 0
        %679 = vmatpush1.bf16.xpose.msra.mxu0 0
        %680 = vmatprep.subr.bf16.mxu0 0
        %681 = vmatpush1.bf16.xpose.msra.mxu0 0
        %682 = vmatprep.subr.bf16.mxu0 0
        %683 = vmatpush1.bf16.xpose.msra.mxu0 0
        %684 = vmatprep.subr.bf16.mxu0 0
        %685 = vmatpush1.bf16.xpose.msra.mxu0 0
        %686 = vmatprep.subr.bf16.mxu0 0
        %687 = vmatpush1.bf16.xpose.msra.mxu0 0
        %688 = vmatprep.subr.bf16.mxu0 0
        %689 = vmatpush1.bf16.xpose.msra.mxu0 0
        %690 = vmatprep.mubr.bf16.mxu0 0
        %691 = vmatmul.mubr.bf16.gmra.mrb[0].mxu0 %v653
        %v692 = vpop.f32.mrb[0].mxu0
        %v693 = vadd.f32 0.0, %v692
        %v694 = vpop.f32.mrb[0].mxu0
        %v695 = vpop.f32.mrb[0].mxu0
        %v696 = vpop.f32.mrb[0].mxu0
        %697 = vdwg.mxu0
        %v699 = vsel %vm651, %v643, 0
        %701 = vmatprep.subr.bf16.mxu0 0
        %702 = vmatpush1.bf16.xpose.msra.mxu0 %v656
        %703 = vmatprep.subr.bf16.mxu0 0
        %704 = vmatpush1.bf16.xpose.msra.mxu0 0
        %705 = vmatprep.subr.bf16.mxu0 0
        %706 = vmatpush1.bf16.xpose.msra.mxu0 0
        %707 = vmatprep.subr.bf16.mxu0 0
        %708 = vmatpush1.bf16.xpose.msra.mxu0 0
        %709 = vmatprep.subr.bf16.mxu0 0
        %710 = vmatpush1.bf16.xpose.msra.mxu0 0
        %711 = vmatprep.subr.bf16.mxu0 0
        %712 = vmatpush1.bf16.xpose.msra.mxu0 0
        %713 = vmatprep.subr.bf16.mxu0 0
        %714 = vmatpush1.bf16.xpose.msra.mxu0 0
        %715 = vmatprep.subr.bf16.mxu0 0
        %716 = vmatpush1.bf16.xpose.msra.mxu0 0
        %717 = vmatprep.subr.bf16.mxu0 0
        %718 = vmatpush1.bf16.xpose.msra.mxu0 0
        %719 = vmatprep.subr.bf16.mxu0 0
        %720 = vmatpush1.bf16.xpose.msra.mxu0 0
        %721 = vmatprep.subr.bf16.mxu0 0
        %722 = vmatpush1.bf16.xpose.msra.mxu0 0
        %723 = vmatprep.subr.bf16.mxu0 0
        %724 = vmatpush1.bf16.xpose.msra.mxu0 0
        %725 = vmatprep.subr.bf16.mxu0 0
        %726 = vmatpush1.bf16.xpose.msra.mxu0 0
        %727 = vmatprep.subr.bf16.mxu0 0
        %728 = vmatpush1.bf16.xpose.msra.mxu0 0
        %729 = vmatprep.subr.bf16.mxu0 0
        %730 = vmatpush1.bf16.xpose.msra.mxu0 0
        %731 = vmatprep.subr.bf16.mxu0 0
        %732 = vmatpush1.bf16.xpose.msra.mxu0 0
        %733 = vmatprep.mubr.bf16.mxu0 0
        %734 = vmatmul.mubr.bf16.gmra.mrb[0].mxu0 %v699
        %v735 = vpop.f32.mrb[0].mxu0
        %v736 = vadd.f32 0.0, %v735
        %v737 = vpop.f32.mrb[0].mxu0
        %v738 = vpop.f32.mrb[0].mxu0
        %v739 = vpop.f32.mrb[0].mxu0
        %740 = vdwg.mxu0
        %742 = vrot.lane.b32.xlu0 %v647, 96
        %v743 = vpop.permute.xlu0 %742
        %v745 = vsel %vm651, %v644, 0
        %v748 = vsel %vm651, %v743, 0
        %750 = vmatprep.subr.bf16.mxu0 0
        %751 = vmatpush1.bf16.xpose.msra.mxu0 %v748
        %752 = vmatprep.subr.bf16.mxu0 0
        %753 = vmatpush1.bf16.xpose.msra.mxu0 0
        %754 = vmatprep.subr.bf16.mxu0 0
        %755 = vmatpush1.bf16.xpose.msra.mxu0 0
        %756 = vmatprep.subr.bf16.mxu0 0
        %757 = vmatpush1.bf16.xpose.msra.mxu0 0
        %758 = vmatprep.subr.bf16.mxu0 0
        %759 = vmatpush1.bf16.xpose.msra.mxu0 0
        %760 = vmatprep.subr.bf16.mxu0 0
        %761 = vmatpush1.bf16.xpose.msra.mxu0 0
        %762 = vmatprep.subr.bf16.mxu0 0
        %763 = vmatpush1.bf16.xpose.msra.mxu0 0
        %764 = vmatprep.subr.bf16.mxu0 0
        %765 = vmatpush1.bf16.xpose.msra.mxu0 0
        %766 = vmatprep.subr.bf16.mxu0 0
        %767 = vmatpush1.bf16.xpose.msra.mxu0 0
        %768 = vmatprep.subr.bf16.mxu0 0
        %769 = vmatpush1.bf16.xpose.msra.mxu0 0
        %770 = vmatprep.subr.bf16.mxu0 0
        %771 = vmatpush1.bf16.xpose.msra.mxu0 0
        %772 = vmatprep.subr.bf16.mxu0 0
        %773 = vmatpush1.bf16.xpose.msra.mxu0 0
        %774 = vmatprep.subr.bf16.mxu0 0
        %775 = vmatpush1.bf16.xpose.msra.mxu0 0
        %776 = vmatprep.subr.bf16.mxu0 0
        %777 = vmatpush1.bf16.xpose.msra.mxu0 0
        %778 = vmatprep.subr.bf16.mxu0 0
        %779 = vmatpush1.bf16.xpose.msra.mxu0 0
        %780 = vmatprep.subr.bf16.mxu0 0
        %781 = vmatpush1.bf16.xpose.msra.mxu0 0
        %782 = vmatprep.mubr.bf16.mxu0 0
        %783 = vmatmul.mubr.bf16.gmra.mrb[0].mxu0 %v745
        %v784 = vpop.f32.mrb[0].mxu0
        %v785 = vadd.f32 0.0, %v784
        %v786 = vpop.f32.mrb[0].mxu0
        %v787 = vpop.f32.mrb[0].mxu0
        %v788 = vpop.f32.mrb[0].mxu0
        %789 = vdwg.mxu0
        %v791 = vsel %vm651, %v645, 0
        %793 = vmatprep.subr.bf16.mxu0 0
        %794 = vmatpush1.bf16.xpose.msra.mxu0 %v748
        %795 = vmatprep.subr.bf16.mxu0 0
        %796 = vmatpush1.bf16.xpose.msra.mxu0 0
        %797 = vmatprep.subr.bf16.mxu0 0
        %798 = vmatpush1.bf16.xpose.msra.mxu0 0
        %799 = vmatprep.subr.bf16.mxu0 0
        %800 = vmatpush1.bf16.xpose.msra.mxu0 0
        %801 = vmatprep.subr.bf16.mxu0 0
        %802 = vmatpush1.bf16.xpose.msra.mxu0 0
        %803 = vmatprep.subr.bf16.mxu0 0
        %804 = vmatpush1.bf16.xpose.msra.mxu0 0
        %805 = vmatprep.subr.bf16.mxu0 0
        %806 = vmatpush1.bf16.xpose.msra.mxu0 0
        %807 = vmatprep.subr.bf16.mxu0 0
        %808 = vmatpush1.bf16.xpose.msra.mxu0 0
        %809 = vmatprep.subr.bf16.mxu0 0
        %810 = vmatpush1.bf16.xpose.msra.mxu0 0
        %811 = vmatprep.subr.bf16.mxu0 0
        %812 = vmatpush1.bf16.xpose.msra.mxu0 0
        %813 = vmatprep.subr.bf16.mxu0 0
        %814 = vmatpush1.bf16.xpose.msra.mxu0 0
        %815 = vmatprep.subr.bf16.mxu0 0
        %816 = vmatpush1.bf16.xpose.msra.mxu0 0
        %817 = vmatprep.subr.bf16.mxu0 0
        %818 = vmatpush1.bf16.xpose.msra.mxu0 0
        %819 = vmatprep.subr.bf16.mxu0 0
        %820 = vmatpush1.bf16.xpose.msra.mxu0 0
        %821 = vmatprep.subr.bf16.mxu0 0
        %822 = vmatpush1.bf16.xpose.msra.mxu0 0
        %823 = vmatprep.subr.bf16.mxu0 0
        %824 = vmatpush1.bf16.xpose.msra.mxu0 0
        %825 = vmatprep.mubr.bf16.mxu0 0
        %826 = vmatmul.mubr.bf16.gmra.mrb[0].mxu0 %v791
        %v827 = vpop.f32.mrb[0].mxu0
        %v828 = vadd.f32 0.0, %v827
        %v829 = vpop.f32.mrb[0].mxu0
        %v830 = vpop.f32.mrb[0].mxu0
        %v831 = vpop.f32.mrb[0].mxu0
        %832 = vdwg.mxu0
        %v833 = vsel %vm641, 1, 0
        %vm834 = vcmp.eq.s32.totalorder %v833, 1
        %v835 = vsel %vm834, %v693, -1e+30
        %v836 = vsel %vm834, %v736, -1e+30
        %v837 = vsel %vm834, %v785, -1e+30
        %v838 = vsel %vm834, %v828, -1e+30
        %v839 = vsel %vm651, %v835, -inf
        %840 = vmax.xlane.f32.xlu0 %v839
        %v841 = vpop.xlane.xlu0 %840
        %v842 = vsel %vm651, %v836, -inf
        %843 = vmax.xlane.f32.xlu0 %v842
        %v844 = vpop.xlane.xlu0 %843
        %v845 = vsel %vm651, %v837, -inf
        %846 = vmax.xlane.f32.xlu0 %v845
        %v847 = vpop.xlane.xlu0 %846
        %v848 = vsel %vm651, %v838, -inf
        %849 = vmax.xlane.f32.xlu0 %v848
        %v850 = vpop.xlane.xlu0 %849
        %v851 = vsub.f32 %v835, %v841
        %v852 = vsub.f32 %v836, %v844
        %v853 = vsub.f32 %v837, %v847
        %v854 = vsub.f32 %v838, %v850
        %v855 = vmul.f32 %v851, 1.442695
        %v856 = vpow.pop %v855
        %v857 = vmul.f32 %v852, 1.442695
        %v858 = vpow.pop %v857
        %v859 = vmul.f32 %v853, 1.442695
        %v860 = vpow.pop %v859
        %v861 = vmul.f32 %v854, 1.442695
        %v862 = vpow.pop %v861
        %v863 = vsel %vm651, %v856, 0.0
        %864 = vadd.xlane.f32.xlu0 %v863
        %v865 = vpop.xlane.xlu0 %864
        %v866 = vsel %vm651, %v858, 0.0
        %867 = vadd.xlane.f32.xlu0 %v866
        %v868 = vpop.xlane.xlu0 %867
        %v869 = vsel %vm651, %v860, 0.0
        %870 = vadd.xlane.f32.xlu0 %v869
        %v871 = vpop.xlane.xlu0 %870
        %v872 = vsel %vm651, %v862, 0.0
        %873 = vadd.xlane.f32.xlu0 %v872
        %v874 = vpop.xlane.xlu0 %873
        %v875 = vrcp.pop %v865
        %v876 = vrcp.pop %v868
        %v877 = vrcp.pop %v871
        %v878 = vrcp.pop %v874
        %v879 = vmul.f32 %v856, %v875
        %v880 = vmul.f32 %v858, %v876
        %v881 = vmul.f32 %v860, %v877
        %v882 = vmul.f32 %v862, %v878
        %v883 = vpack.c.bf16 %v879, %v879
        %v884 = vpack.c.bf16 %v880, %v880
        %v885 = vpack.c.bf16 %v881, %v881
        %v886 = vpack.c.bf16 %v882, %v882
        %v887 = vpack.c.bf16 %v546, %v546
        %v888 = vpack.c.bf16 %v553, %v553
        %890 = vrot.lane.b32.xlu0 %v887, 80
        %v891 = vpop.permute.xlu0 %890
        %v893 = vsel %vm651, %v883, 0
        %vm895 = vcmask 1043456
        %v897 = vsel %vm895, %v891, 0
        %899 = vmatprep.subr.bf16.mxu0 0
        %900 = vmatpush1.bf16.msra.mxu0 %v897
        %901 = vmatprep.subr.bf16.mxu0 0
        %902 = vmatpush1.bf16.msra.mxu0 0
        %903 = vmatprep.subr.bf16.mxu0 0
        %904 = vmatpush1.bf16.msra.mxu0 0
        %905 = vmatprep.subr.bf16.mxu0 0
        %906 = vmatpush1.bf16.msra.mxu0 0
        %907 = vmatprep.subr.bf16.mxu0 0
        %908 = vmatpush1.bf16.msra.mxu0 0
        %909 = vmatprep.subr.bf16.mxu0 0
        %910 = vmatpush1.bf16.msra.mxu0 0
        %911 = vmatprep.subr.bf16.mxu0 0
        %912 = vmatpush1.bf16.msra.mxu0 0
        %913 = vmatprep.subr.bf16.mxu0 0
        %914 = vmatpush1.bf16.msra.mxu0 0
        %915 = vmatprep.subr.bf16.mxu0 0
        %916 = vmatpush1.bf16.msra.mxu0 0
        %917 = vmatprep.subr.bf16.mxu0 0
        %918 = vmatpush1.bf16.msra.mxu0 0
        %919 = vmatprep.subr.bf16.mxu0 0
        %920 = vmatpush1.bf16.msra.mxu0 0
        %921 = vmatprep.subr.bf16.mxu0 0
        %922 = vmatpush1.bf16.msra.mxu0 0
        %923 = vmatprep.subr.bf16.mxu0 0
        %924 = vmatpush1.bf16.msra.mxu0 0
        %925 = vmatprep.subr.bf16.mxu0 0
        %926 = vmatpush1.bf16.msra.mxu0 0
        %927 = vmatprep.subr.bf16.mxu0 0
        %928 = vmatpush1.bf16.msra.mxu0 0
        %929 = vmatprep.subr.bf16.mxu0 0
        %930 = vmatpush1.bf16.msra.mxu0 0
        %931 = vmatprep.mubr.bf16.mxu0 0
        %932 = vmatmul.mubr.bf16.gmra.mrb[0].mxu0 %v893
        %v933 = vpop.f32.mrb[0].mxu0
        %v934 = vadd.f32 0.0, %v933
        %v935 = vpop.f32.mrb[0].mxu0
        %v936 = vpop.f32.mrb[0].mxu0
        %v937 = vpop.f32.mrb[0].mxu0
        %938 = vdwg.mxu0
        %v940 = vsel %vm651, %v884, 0
        %942 = vmatprep.subr.bf16.mxu0 0
        %943 = vmatpush1.bf16.msra.mxu0 %v897
        %944 = vmatprep.subr.bf16.mxu0 0
        %945 = vmatpush1.bf16.msra.mxu0 0
        %946 = vmatprep.subr.bf16.mxu0 0
        %947 = vmatpush1.bf16.msra.mxu0 0
        %948 = vmatprep.subr.bf16.mxu0 0
        %949 = vmatpush1.bf16.msra.mxu0 0
        %950 = vmatprep.subr.bf16.mxu0 0
        %951 = vmatpush1.bf16.msra.mxu0 0
        %952 = vmatprep.subr.bf16.mxu0 0
        %953 = vmatpush1.bf16.msra.mxu0 0
        %954 = vmatprep.subr.bf16.mxu0 0
        %955 = vmatpush1.bf16.msra.mxu0 0
        %956 = vmatprep.subr.bf16.mxu0 0
        %957 = vmatpush1.bf16.msra.mxu0 0
        %958 = vmatprep.subr.bf16.mxu0 0
        %959 = vmatpush1.bf16.msra.mxu0 0
        %960 = vmatprep.subr.bf16.mxu0 0
        %961 = vmatpush1.bf16.msra.mxu0 0
        %962 = vmatprep.subr.bf16.mxu0 0
        %963 = vmatpush1.bf16.msra.mxu0 0
        %964 = vmatprep.subr.bf16.mxu0 0
        %965 = vmatpush1.bf16.msra.mxu0 0
        %966 = vmatprep.subr.bf16.mxu0 0
        %967 = vmatpush1.bf16.msra.mxu0 0
        %968 = vmatprep.subr.bf16.mxu0 0
        %969 = vmatpush1.bf16.msra.mxu0 0
        %970 = vmatprep.subr.bf16.mxu0 0
        %971 = vmatpush1.bf16.msra.mxu0 0
        %972 = vmatprep.subr.bf16.mxu0 0
        %973 = vmatpush1.bf16.msra.mxu0 0
        %974 = vmatprep.mubr.bf16.mxu0 0
        %975 = vmatmul.mubr.bf16.gmra.mrb[0].mxu0 %v940
        %v976 = vpop.f32.mrb[0].mxu0
        %v977 = vadd.f32 0.0, %v976
        %v978 = vpop.f32.mrb[0].mxu0
        %v979 = vpop.f32.mrb[0].mxu0
        %v980 = vpop.f32.mrb[0].mxu0
        %981 = vdwg.mxu0
        %983 = vrot.lane.b32.xlu0 %v888, 80
        %v984 = vpop.permute.xlu0 %983
        %v986 = vsel %vm651, %v885, 0
        %v989 = vsel %vm895, %v984, 0
        %991 = vmatprep.subr.bf16.mxu0 0
        %992 = vmatpush1.bf16.msra.mxu0 %v989
        %993 = vmatprep.subr.bf16.mxu0 0
        %994 = vmatpush1.bf16.msra.mxu0 0
        %995 = vmatprep.subr.bf16.mxu0 0
        %996 = vmatpush1.bf16.msra.mxu0 0
        %997 = vmatprep.subr.bf16.mxu0 0
        %998 = vmatpush1.bf16.msra.mxu0 0
        %999 = vmatprep.subr.bf16.mxu0 0
        %1000 = vmatpush1.bf16.msra.mxu0 0
        %1001 = vmatprep.subr.bf16.mxu0 0
        %1002 = vmatpush1.bf16.msra.mxu0 0
        %1003 = vmatprep.subr.bf16.mxu0 0
        %1004 = vmatpush1.bf16.msra.mxu0 0
        %1005 = vmatprep.subr.bf16.mxu0 0
        %1006 = vmatpush1.bf16.msra.mxu0 0
        %1007 = vmatprep.subr.bf16.mxu0 0
        %1008 = vmatpush1.bf16.msra.mxu0 0
        %1009 = vmatprep.subr.bf16.mxu0 0
        %1010 = vmatpush1.bf16.msra.mxu0 0
        %1011 = vmatprep.subr.bf16.mxu0 0
        %1012 = vmatpush1.bf16.msra.mxu0 0
        %1013 = vmatprep.subr.bf16.mxu0 0
        %1014 = vmatpush1.bf16.msra.mxu0 0
        %1015 = vmatprep.subr.bf16.mxu0 0
        %1016 = vmatpush1.bf16.msra.mxu0 0
        %1017 = vmatprep.subr.bf16.mxu0 0
        %1018 = vmatpush1.bf16.msra.mxu0 0
        %1019 = vmatprep.subr.bf16.mxu0 0
        %1020 = vmatpush1.bf16.msra.mxu0 0
        %1021 = vmatprep.subr.bf16.mxu0 0
        %1022 = vmatpush1.bf16.msra.mxu0 0
        %1023 = vmatprep.mubr.bf16.mxu0 0
        %1024 = vmatmul.mubr.bf16.gmra.mrb[0].mxu0 %v986
        %v1025 = vpop.f32.mrb[0].mxu0
        %v1026 = vadd.f32 0.0, %v1025
        %v1027 = vpop.f32.mrb[0].mxu0
        %v1028 = vpop.f32.mrb[0].mxu0
        %v1029 = vpop.f32.mrb[0].mxu0
        %1030 = vdwg.mxu0
        %v1032 = vsel %vm651, %v886, 0
        %1034 = vmatprep.subr.bf16.mxu0 0
        %1035 = vmatpush1.bf16.msra.mxu0 %v989
        %1036 = vmatprep.subr.bf16.mxu0 0
        %1037 = vmatpush1.bf16.msra.mxu0 0
        %1038 = vmatprep.subr.bf16.mxu0 0
        %1039 = vmatpush1.bf16.msra.mxu0 0
        %1040 = vmatprep.subr.bf16.mxu0 0
        %1041 = vmatpush1.bf16.msra.mxu0 0
        %1042 = vmatprep.subr.bf16.mxu0 0
        %1043 = vmatpush1.bf16.msra.mxu0 0
        %1044 = vmatprep.subr.bf16.mxu0 0
        %1045 = vmatpush1.bf16.msra.mxu0 0
        %1046 = vmatprep.subr.bf16.mxu0 0
        %1047 = vmatpush1.bf16.msra.mxu0 0
        %1048 = vmatprep.subr.bf16.mxu0 0
        %1049 = vmatpush1.bf16.msra.mxu0 0
        %1050 = vmatprep.subr.bf16.mxu0 0
        %1051 = vmatpush1.bf16.msra.mxu0 0
        %1052 = vmatprep.subr.bf16.mxu0 0
        %1053 = vmatpush1.bf16.msra.mxu0 0
        %1054 = vmatprep.subr.bf16.mxu0 0
        %1055 = vmatpush1.bf16.msra.mxu0 0
        %1056 = vmatprep.subr.bf16.mxu0 0
        %1057 = vmatpush1.bf16.msra.mxu0 0
        %1058 = vmatprep.subr.bf16.mxu0 0
        %1059 = vmatpush1.bf16.msra.mxu0 0
        %1060 = vmatprep.subr.bf16.mxu0 0
        %1061 = vmatpush1.bf16.msra.mxu0 0
        %1062 = vmatprep.subr.bf16.mxu0 0
        %1063 = vmatpush1.bf16.msra.mxu0 0
        %1064 = vmatprep.subr.bf16.mxu0 0
        %1065 = vmatpush1.bf16.msra.mxu0 0
        %1066 = vmatprep.mubr.bf16.mxu0 0
        %1067 = vmatmul.mubr.bf16.gmra.mrb[0].mxu0 %v1032
        %v1068 = vpop.f32.mrb[0].mxu0
        %v1069 = vadd.f32 0.0, %v1068
        %v1070 = vpop.f32.mrb[0].mxu0
        %v1071 = vpop.f32.mrb[0].mxu0
        %v1072 = vpop.f32.mrb[0].mxu0
        %1073 = vdwg.mxu0
        %1075 = vrot.lane.b32.xlu0 %v977, 8
        %v1076 = vpop.permute.xlu0 %1075
        %1079 = vrot.lane.b32.xlu0 %v1026, 16
        %v1080 = vpop.permute.xlu0 %1079
        %1083 = vrot.lane.b32.xlu0 %v1069, 24
        %v1084 = vpop.permute.xlu0 %1083
        %v1086 = vsel %vm651, %v934, %v1076
        %vm1087 = vcmask 130048
        %v1088 = vsel %vm1087, %v1086, %v1080
        %vm1089 = vcmask 195584
        %v1090 = vsel %vm1089, %v1088, %v1084
        %v1091 = vpack.c.bf16 %v1090, %v1090
        %v1092 = vld [vmem:[%s6] sm:$0xf]
        %v1093 = vld [vmem:[%s6 + $0x4] sm:$0xf]
        %v1094 = vld [vmem:[%s6 + $0x8] sm:$0xf]
        %v1095 = vld [vmem:[%s6 + $0xc] sm:$0xf]
        %v1096 = vld [vmem:[%s7] sm:$0x1]
        %v1098 = vlaneseq
        %v1099 = vshrl.u32 %v1098, 7
        %v1100 = vsub.s32 0, %v1099
        %v1101 = vrot.slane %v1096, %v1100
        %v1107 = vunpack.c.l.b16 %v1092
        %v1108 = vunpack.c.l.b16 %v1093
        %v1109 = vunpack.c.l.b16 %v1094
        %v1110 = vunpack.c.l.b16 %v1095
        %v1111 = vpack.c.b16 %v1108, %v1107
        %v1112 = vpack.c.b16 %v1110, %v1109
        %v1116 = vsel %vm468, %v1091, 0
        %1118 = vmatprep.subr.bf16.mxu0 0
        %1119 = vmatpush1.bf16.msra.mxu0 %v1111
        %1120 = vmatprep.subr.bf16.mxu0 0
        %1121 = vmatpush1.bf16.msra.mxu0 %v1112
        %1122 = vmatprep.subr.bf16.mxu0 0
        %1123 = vmatpush1.bf16.msra.mxu0 0
        %1124 = vmatprep.subr.bf16.mxu0 0
        %1125 = vmatpush1.bf16.msra.mxu0 0
        %1126 = vmatprep.subr.bf16.mxu0 0
        %1127 = vmatpush1.bf16.msra.mxu0 0
        %1128 = vmatprep.subr.bf16.mxu0 0
        %1129 = vmatpush1.bf16.msra.mxu0 0
        %1130 = vmatprep.subr.bf16.mxu0 0
        %1131 = vmatpush1.bf16.msra.mxu0 0
        %1132 = vmatprep.subr.bf16.mxu0 0
        %1133 = vmatpush1.bf16.msra.mxu0 0
        %1134 = vmatprep.subr.bf16.mxu0 0
        %1135 = vmatpush1.bf16.msra.mxu0 0
        %1136 = vmatprep.subr.bf16.mxu0 0
        %1137 = vmatpush1.bf16.msra.mxu0 0
        %1138 = vmatprep.subr.bf16.mxu0 0
        %1139 = vmatpush1.bf16.msra.mxu0 0
        %1140 = vmatprep.subr.bf16.mxu0 0
        %1141 = vmatpush1.bf16.msra.mxu0 0
        %1142 = vmatprep.subr.bf16.mxu0 0
        %1143 = vmatpush1.bf16.msra.mxu0 0
        %1144 = vmatprep.subr.bf16.mxu0 0
        %1145 = vmatpush1.bf16.msra.mxu0 0
        %1146 = vmatprep.subr.bf16.mxu0 0
        %1147 = vmatpush1.bf16.msra.mxu0 0
        %1148 = vmatprep.subr.bf16.mxu0 0
        %1149 = vmatpush1.bf16.msra.mxu0 0
        %1150 = vmatprep.mubr.bf16.mxu0 0
        %1151 = vmatmul.mubr.bf16.gmra.mrb[0].mxu0 %v1116
        %v1152 = vpop.f32.mrb[0].mxu0
        %v1153 = vadd.f32 %v1101, %v1152
        %v1154 = vpop.f32.mrb[0].mxu0
        %v1155 = vpop.f32.mrb[0].mxu0
        %v1156 = vpop.f32.mrb[0].mxu0
        %1157 = vdwg.mxu0
        %v1158 = vadd.f32 %v463, %v1153
        %v1159 = vld [vmem:[%s8] sm:$0x1]
        %v1160 = vmul.f32 %v1158, %v1158
        %v1161 = vsel %vm468, %v1160, 0.0
        %1162 = vadd.xlane.f32.xlu0 %v1161
        %v1163 = vpop.xlane.xlu0 %1162
        %v1164 = vmul.f32 %v1163, %v472
        %v1165 = vadd.f32 %v1164, 1e-06
        %v1166 = vrsqrt.pop %v1165
        %v1167 = vmul.f32 %v1158, %v1166
        %v1169 = vlaneseq
        %v1170 = vshrl.u32 %v1169, 7
        %v1171 = vsub.s32 0, %v1170
        %v1172 = vrot.slane %v1159, %v1171
        %v1174 = vmul.f32 %v1167, %v1172
        %v1175 = vpack.c.bf16 %v1174, %v1174
        %v1176 = vld [vmem:[%s9] sm:$0xff]
        %v1177 = vld [vmem:[%s9 + $0x8] sm:$0xff]
        %v1178 = vld [vmem:[%s9 + $0x10] sm:$0xff]
        %v1179 = vld [vmem:[%s9 + $0x18] sm:$0xff]
        %v1180 = vld [vmem:[%s10] sm:$0x3]
        %v1182 = vlaneseq
        %v1183 = vshrl.u32 %v1182, 7
        %v1184 = vsub.s32 0, %v1183
        %v1185 = vrot.slane %v1180, %v1184
        %v1186 = vlaneseq
        %v1187 = vshrl.u32 %v1186, 7
        %v1188 = vsub.s32 1, %v1187
        %v1189 = vrot.slane %v1180, %v1188
        %v1196 = vunpack.c.l.b16 %v1176
        %v1197 = vunpack.c.h.b16 %v1176
        %v1198 = vunpack.c.l.b16 %v1177
        %v1199 = vunpack.c.h.b16 %v1177
        %v1200 = vunpack.c.l.b16 %v1178
        %v1201 = vunpack.c.h.b16 %v1178
        %v1202 = vunpack.c.l.b16 %v1179
        %v1203 = vunpack.c.h.b16 %v1179
        %v1204 = vpack.c.b16 %v1198, %v1196
        %v1205 = vpack.c.b16 %v1199, %v1197
        %v1206 = vpack.c.b16 %v1202, %v1200
        %v1207 = vpack.c.b16 %v1203, %v1201
        %v1213 = vsel %vm468, %v1175, 0
        %1215 = vmatprep.subr.bf16.mxu0 %v1205
        %1216 = vmatpush1.bf16.msra.mxu0 %v1204
        %1217 = vmatprep.subr.bf16.mxu0 %v1207
        %1218 = vmatpush1.bf16.msra.mxu0 %v1206
        %1219 = vmatprep.subr.bf16.mxu0 0
        %1220 = vmatpush1.bf16.msra.mxu0 0
        %1221 = vmatprep.subr.bf16.mxu0 0
        %1222 = vmatpush1.bf16.msra.mxu0 0
        %1223 = vmatprep.subr.bf16.mxu0 0
        %1224 = vmatpush1.bf16.msra.mxu0 0
        %1225 = vmatprep.subr.bf16.mxu0 0
        %1226 = vmatpush1.bf16.msra.mxu0 0
        %1227 = vmatprep.subr.bf16.mxu0 0
        %1228 = vmatpush1.bf16.msra.mxu0 0
        %1229 = vmatprep.subr.bf16.mxu0 0
        %1230 = vmatpush1.bf16.msra.mxu0 0
        %1231 = vmatprep.subr.bf16.mxu0 0
        %1232 = vmatpush1.bf16.msra.mxu0 0
        %1233 = vmatprep.subr.bf16.mxu0 0
        %1234 = vmatpush1.bf16.msra.mxu0 0
        %1235 = vmatprep.subr.bf16.mxu0 0
        %1236 = vmatpush1.bf16.msra.mxu0 0
        %1237 = vmatprep.subr.bf16.mxu0 0
        %1238 = vmatpush1.bf16.msra.mxu0 0
        %1239 = vmatprep.subr.bf16.mxu0 0
        %1240 = vmatpush1.bf16.msra.mxu0 0
        %1241 = vmatprep.subr.bf16.mxu0 0
        %1242 = vmatpush1.bf16.msra.mxu0 0
        %1243 = vmatprep.subr.bf16.mxu0 0
        %1244 = vmatpush1.bf16.msra.mxu0 0
        %1245 = vmatprep.subr.bf16.mxu0 0
        %1246 = vmatpush1.bf16.msra.mxu0 0
        %1247 = vmatprep.mubr.bf16.mxu0 0
        %1248 = vmatmul.mubr.bf16.gmra.mrb[0].mxu0 %v1213
        %v1249 = vpop.f32.mrb[0].mxu0
        %v1250 = vadd.f32 %v1185, %v1249
        %v1251 = vpop.f32.mrb[0].mxu0
        %v1252 = vadd.f32 %v1189, %v1251
        %v1253 = vpop.f32.mrb[0].mxu0
        %v1254 = vpop.f32.mrb[0].mxu0
        %1255 = vdwg.mxu0
        %v1256 = vxor.u32 %v1250, 2147483648
        %v1257 = vmul.f32 %v1256, 1.442695
        %v1258 = vpow.pop %v1257
        %v1259 = vadd.f32 %v1258, 1.0
        %v1260 = vrcp.pop %v1259
        %v1261 = vmul.f32 1.0, %v1260
        %v1262 = vmul.f32 %v1250, %v1261
        %v1263 = vmul.f32 %v1262, %v1252
        %v1264 = vpack.c.bf16 %v1263, %v1263
        %v1265 = vld [vmem:[%s11] sm:$0xf]
        %v1266 = vld [vmem:[%s11 + $0x4] sm:$0xf]
        %v1267 = vld [vmem:[%s11 + $0x8] sm:$0xf]
        %v1268 = vld [vmem:[%s11 + $0xc] sm:$0xf]
        %v1269 = vld [vmem:[%s11 + $0x10] sm:$0xf]
        %v1270 = vld [vmem:[%s11 + $0x14] sm:$0xf]
        %v1271 = vld [vmem:[%s11 + $0x18] sm:$0xf]
        %v1272 = vld [vmem:[%s11 + $0x1c] sm:$0xf]
        %v1273 = vld [vmem:[%s11 + $0x20] sm:$0xf]
        %v1274 = vld [vmem:[%s11 + $0x24] sm:$0xf]
        %v1275 = vld [vmem:[%s11 + $0x28] sm:$0xf]
        %v1276 = vld [vmem:[%s11 + $0x2c] sm:$0xf]
        %v1277 = vld [vmem:[%s11 + $0x30] sm:$0xf]
        %v1278 = vld [vmem:[%s11 + $0x34] sm:$0xf]
        %v1279 = vld [vmem:[%s11 + $0x38] sm:$0xf]
        %v1280 = vld [vmem:[%s11 + $0x3c] sm:$0xf]
        %v1281 = vld [vmem:[%s12] sm:$0x1]
        %v1283 = vlaneseq
        %v1284 = vshrl.u32 %v1283, 7
        %v1285 = vsub.s32 0, %v1284
        %v1286 = vrot.slane %v1281, %v1285
        %v1304 = vunpack.c.l.b16 %v1265
        %v1305 = vunpack.c.l.b16 %v1266
        %v1306 = vunpack.c.l.b16 %v1267
        %v1307 = vunpack.c.l.b16 %v1268
        %v1308 = vunpack.c.l.b16 %v1269
        %v1309 = vunpack.c.l.b16 %v1270
        %v1310 = vunpack.c.l.b16 %v1271
        %v1311 = vunpack.c.l.b16 %v1272
        %v1312 = vunpack.c.l.b16 %v1273
        %v1313 = vunpack.c.l.b16 %v1274
        %v1314 = vunpack.c.l.b16 %v1275
        %v1315 = vunpack.c.l.b16 %v1276
        %v1316 = vunpack.c.l.b16 %v1277
        %v1317 = vunpack.c.l.b16 %v1278
        %v1318 = vunpack.c.l.b16 %v1279
        %v1319 = vunpack.c.l.b16 %v1280
        %v1320 = vpack.c.b16 %v1305, %v1304
        %v1321 = vpack.c.b16 %v1307, %v1306
        %v1322 = vpack.c.b16 %v1309, %v1308
        %v1323 = vpack.c.b16 %v1311, %v1310
        %v1324 = vpack.c.b16 %v1313, %v1312
        %v1325 = vpack.c.b16 %v1315, %v1314
        %v1326 = vpack.c.b16 %v1317, %v1316
        %v1327 = vpack.c.b16 %v1319, %v1318
        %1336 = vmatprep.subr.bf16.mxu0 0
        %1337 = vmatpush1.bf16.msra.mxu0 %v1320
        %1338 = vmatprep.subr.bf16.mxu0 0
        %1339 = vmatpush1.bf16.msra.mxu0 %v1321
        %1340 = vmatprep.subr.bf16.mxu0 0
        %1341 = vmatpush1.bf16.msra.mxu0 %v1322
        %1342 = vmatprep.subr.bf16.mxu0 0
        %1343 = vmatpush1.bf16.msra.mxu0 %v1323
        %1344 = vmatprep.subr.bf16.mxu0 0
        %1345 = vmatpush1.bf16.msra.mxu0 %v1324
        %1346 = vmatprep.subr.bf16.mxu0 0
        %1347 = vmatpush1.bf16.msra.mxu0 %v1325
        %1348 = vmatprep.subr.bf16.mxu0 0
        %1349 = vmatpush1.bf16.msra.mxu0 %v1326
        %1350 = vmatprep.subr.bf16.mxu0 0
        %1351 = vmatpush1.bf16.msra.mxu0 %v1327
        %1352 = vmatprep.subr.bf16.mxu0 0
        %1353 = vmatpush1.bf16.msra.mxu0 0
        %1354 = vmatprep.subr.bf16.mxu0 0
        %1355 = vmatpush1.bf16.msra.mxu0 0
        %1356 = vmatprep.subr.bf16.mxu0 0
        %1357 = vmatpush1.bf16.msra.mxu0 0
        %1358 = vmatprep.subr.bf16.mxu0 0
        %1359 = vmatpush1.bf16.msra.mxu0 0
        %1360 = vmatprep.subr.bf16.mxu0 0
        %1361 = vmatpush1.bf16.msra.mxu0 0
        %1362 = vmatprep.subr.bf16.mxu0 0
        %1363 = vmatpush1.bf16.msra.mxu0 0
        %1364 = vmatprep.subr.bf16.mxu0 0
        %1365 = vmatpush1.bf16.msra.mxu0 0
        %1366 = vmatprep.subr.bf16.mxu0 0
        %1367 = vmatpush1.bf16.msra.mxu0 0
        %1368 = vmatprep.mubr.bf16.mxu0 0
        %1369 = vmatmul.mubr.bf16.gmra.mrb[0].mxu0 %v1264
        %v1370 = vpop.f32.mrb[0].mxu0
        %v1371 = vadd.f32 %v1286, %v1370
        %v1372 = vpop.f32.mrb[0].mxu0
        %v1373 = vpop.f32.mrb[0].mxu0
        %v1374 = vpop.f32.mrb[0].mxu0
        %1375 = vdwg.mxu0
        %v1376 = vadd.f32 %v1158, %v1371
        %1377 = vst.msk [vmem:[%s457] sm:$0xff] %vm468, %v1376
        %s1378 = sand.u32 %s315, 1
        %s1379 = scalar_lea.sflag [#allocation4], %s1378
        %s1380 = sand.u32 %s315, 1
        %s1381 = smul.addr %s1380, 8
        %s1382 = scalar_lea.vmem [#allocation7], %s1381
        // Predicated region
        $region81: #{tpu_custom_call.1} parent=71 // pred_check
          %p1383 = pneg %p325
        $region82: #{tpu_custom_call.1} parent=71 // pred_check_branch
          %1385 = sbr.rel (%p1383) target = $region84
        $region83: #{tpu_custom_call.1} parent=71 // pred_region
          %s1387 = ssub.s32 128, 128
          %1388 = vsyncadd %s1379, %s1387
          %s1389 = smul.addr %s29, 128
          %s1390 = scalar_lea.hbm %s13, %s1389
          %s1392 = sshll.u32 %s1382, 4
          %s1393 = int_to_ptr.vmem [resolvable:$true] %s1392
          %1395 = dma.vmem_to_hbm [thread:$0]  %s1393, 128, %s1390, %s1379
        $region84: #{tpu_custom_call.1} parent=71 // pred_fallthru
          _
      $region72: #{tpu_custom_call.1} parent=5 // pred_fallthru
        _
      %p1396 = scmp.le.s32.totalorder 2, %s24
      // Predicated region
      $region85: #{tpu_custom_call.1} parent=5 // pred_check
        %p1397 = pneg %p1396
      $region86: #{tpu_custom_call.1} parent=5 // pred_check_branch
        %1399 = sbr.rel (%p1397) target = $region88
      $region87: #{tpu_custom_call.1} parent=5 // pred_region
        %s1400 = ssub.s32 %s24, 2
        // Predicated region
        $region89: #{tpu_custom_call.1} parent=87 // pred_check
          %p1401 = pneg %p331
        $region90: #{tpu_custom_call.1} parent=87 // pred_check_branch
          %1403 = sbr.rel (%p1401) target = $region92
        $region91: #{tpu_custom_call.1} parent=87 // pred_region
          %s1404 = sand.u32 %s316, 1
          %s1405 = scalar_lea.sflag [#allocation4], %s1404
          %s1406 = sand.u32 %s316, 1
          %s1407 = smul.addr %s1406, 8
          %s1408 = scalar_lea.vmem [#allocation7], %s1407
          %1409 = dma.done %s1405, 128
        $region92: #{tpu_custom_call.1} parent=87 // pred_fallthru
          _
      $region88: #{tpu_custom_call.1} parent=5 // pred_fallthru
        _
    $region6: #{tpu_custom_call.1} parent=1 // loop_footer
      %s28 = sadd.s32 1, %s24
    $region7: #{tpu_custom_call.1} parent=1 // loop_footer_branch
      %23 = sbr.rel target = $region3
    $region8: #{tpu_custom_call.1} parent=1 // loop_exit
      _
    %1410 = vsyncpa [#allocation3], 1
    %s1411 = scalar_lea.sflag [#allocation3], 1
    %1412 = vsyncpa %s1411, 1
    %1413 = vsyncpa [#allocation6], 1
    %1414 = vsyncpa [#allocation4], 1
    %s1415 = scalar_lea.sflag [#allocation4], 1
    %1416 = vsyncpa %s1415, 1

</llo_original>
